<compile_context>
chip_gen: v6e
topology: v6e:2x2x1
jax: 0.10.0
libtpu: 0.0.40
codegen_flags: <defaults>
</compile_context>

<pallas_src>
import math

import jax
import jax.numpy as jnp
from jax.experimental import pallas as pl
from jax.experimental.pallas import tpu as pltpu


def _make_block_kernel(n_head: int, eps: float = 1e-5):
    def kernel(x_ref,
               wqkv_ref, bqkv_ref,          # in-proj  (D, 3D) bf16, (1, 3D) f32
               wout_ref, bout_ref,          # out-proj (D, D)  bf16, (1, D)  f32
               g1_ref, be1_ref,             # ln_1     (1, D), (1, D)
               g2_ref, be2_ref,             # ln_2     (1, D), (1, D)
               wfc_ref, bfc_ref,            # c_fc     (D, 4D) bf16, (1, 4D) f32
               wproj_ref, bproj_ref,        # c_proj   (4D, D) bf16, (1, D)  f32
               o_ref):
        bf16 = jnp.bfloat16
        x = x_ref[0].astype(jnp.float32)             # (S, D)
        S, D = x.shape
        hd = D // n_head
        scale = 1.0 / math.sqrt(hd)

        # --- hoist (1, N) parameter loads: loaded once, reused everywhere ---
        bqkv = bqkv_ref[0]
        bout = bout_ref[0]
        g1, be1 = g1_ref[0], be1_ref[0]
        g2, be2 = g2_ref[0], be2_ref[0]
        bfc = bfc_ref[0]
        bproj = bproj_ref[0]

        def layernorm(v, g, b):
            mu = jnp.mean(v, axis=-1, keepdims=True)
            var = jnp.mean((v - mu) ** 2, axis=-1, keepdims=True)
            return (v - mu) * jax.lax.rsqrt(var + eps) * g + b

        # ---- ln_1 -> fused QKV projection (bf16 MXU, f32 accumulate) ----
        h1 = layernorm(x, g1, be1)
        qkv = jnp.dot(h1.astype(bf16), wqkv_ref[...],
                      preferred_element_type=jnp.float32) + bqkv   # (S, 3D) f32

        # ---- head-batched multi-head self-attention (attn_mask is None) ----
        # scale folded into the q cast; heads become a leading batch dim so the
        # MXU sees one dense batched GEMM stream instead of n_head tiny matmuls.
        q = jnp.transpose((qkv[:, 0 * D:1 * D] * scale).reshape(S, n_head, hd),
                          (1, 0, 2)).astype(bf16)                  # (H, S, hd)
        k = jnp.transpose(qkv[:, 1 * D:2 * D].reshape(S, n_head, hd),
                          (1, 0, 2)).astype(bf16)                  # (H, S, hd)
        v = jnp.transpose(qkv[:, 2 * D:3 * D].reshape(S, n_head, hd),
                          (1, 0, 2)).astype(bf16)                  # (H, S, hd)

        s = jnp.einsum("hqd,hkd->hqk", q, k,
                       preferred_element_type=jnp.float32)         # (H, S, S) f32
        s = s - jnp.max(s, axis=-1, keepdims=True)
        p = jnp.exp(s)
        p = p * pl.reciprocal(jnp.sum(p, axis=-1, keepdims=True), approx=True)

        ao = jnp.einsum("hqk,hkd->hqd", p.astype(bf16), v,
                        preferred_element_type=jnp.float32)        # (H, S, hd)
        attn = jnp.transpose(ao, (1, 0, 2)).reshape(S, D)          # (S, D)
        attn = jnp.dot(attn.astype(bf16), wout_ref[...],
                       preferred_element_type=jnp.float32) + bout

        # ---- first residual ----
        x1 = x + attn

        # ---- ln_2 + MLP (QuickGELU) ----
        h2 = layernorm(x1, g2, be2)
        fc = jnp.dot(h2.astype(bf16), wfc_ref[...],
                     preferred_element_type=jnp.float32) + bfc
        act = fc * jax.nn.sigmoid(1.702 * fc)                      # QuickGELU
        proj = jnp.dot(act.astype(bf16), wproj_ref[...],
                       preferred_element_type=jnp.float32) + bproj

        # ---- second residual ----
        o_ref[0] = (x1 + proj).astype(o_ref.dtype)

    return kernel


def residual_attention_block(x, params, n_head):
    """x: (B, S, D) float32. params: dict of pre-transposed f32 weights."""
    B, S, D = x.shape
    hd = D // n_head
    kernel = _make_block_kernel(n_head)

    # Cast the matmul weights to bf16 (halves VMEM/HBM bytes, MXU-native rate);
    # biases and LayerNorm params stay f32 (added/applied in f32).
    kp = dict(params)
    for name in ("w_qkv", "w_out", "w_fc", "w_proj"):
        kp[name] = params[name].astype(jnp.bfloat16)

    param_order = ("w_qkv", "b_qkv", "w_out", "b_out",
                   "g1", "be1", "g2", "be2",
                   "w_fc", "b_fc", "w_proj", "b_proj")

    def full_spec(arr):
        # whole array resident, constant index across the grid
        nd = arr.ndim
        return pl.BlockSpec(arr.shape, lambda b, _nd=nd: (0,) * _nd)

    in_specs = [pl.BlockSpec((1, S, D), lambda b: (b, 0, 0))] + [
        full_spec(kp[k]) for k in param_order]

    # Advisory cost estimate (lets XLA schedule neighbors around this call).
    flops = B * (2 * S * D * 3 * D            # qkv proj
                 + 4 * n_head * S * S * hd    # q@k^T + p@v
                 + 2 * S * D * D              # out proj
                 + 2 * S * D * 4 * D          # c_fc
                 + 2 * S * 4 * D * D)         # c_proj
    transcendentals = B * (n_head * S * S + S * 4 * D)   # softmax exp + sigmoid
    bytes_accessed = (2 * int(x.size) * x.dtype.itemsize
                      + sum(int(kp[k].size) * kp[k].dtype.itemsize
                            for k in param_order))

    return pl.pallas_call(
        kernel,
        out_shape=jax.ShapeDtypeStruct((B, S, D), x.dtype),
        grid_spec=pltpu.PrefetchScalarGridSpec(
            num_scalar_prefetch=0,
            grid=(B,),
            in_specs=in_specs,
            out_specs=pl.BlockSpec((1, S, D), lambda b: (b, 0, 0)),
        ),
        compiler_params=pltpu.CompilerParams(
            dimension_semantics=("parallel",),
            vmem_limit_bytes=64 * 1024 * 1024),
        cost_estimate=pl.CostEstimate(
            flops=int(flops),
            transcendentals=int(transcendentals),
            bytes_accessed=int(bytes_accessed)),
    )(x, *[kp[k] for k in param_order])


def ref_forward(x, params, n_head):
    """Plain-JAX f32 reference matching the PyTorch module semantics."""
    B, S, D = x.shape
    hd = D // n_head
    eps = 1e-5

    def layernorm(v, g, b):
        mu = jnp.mean(v, axis=-1, keepdims=True)
        var = jnp.mean((v - mu) ** 2, axis=-1, keepdims=True)
        return (v - mu) / jnp.sqrt(var + eps) * g + b

    h1 = layernorm(x, params["g1"][0], params["be1"][0])
    qkv = h1 @ params["w_qkv"] + params["b_qkv"][0]
    q, k, v = qkv[..., :D], qkv[..., D:2 * D], qkv[..., 2 * D:]
    q = q.reshape(B, S, n_head, hd).transpose(0, 2, 1, 3) / math.sqrt(hd)
    k = k.reshape(B, S, n_head, hd).transpose(0, 2, 1, 3)
    v = v.reshape(B, S, n_head, hd).transpose(0, 2, 1, 3)
    s = jnp.einsum("bhqd,bhkd->bhqk", q, k)
    p = jax.nn.softmax(s, axis=-1)
    a = jnp.einsum("bhqk,bhkd->bhqd", p, v).transpose(0, 2, 1, 3).reshape(B, S, D)
    a = a @ params["w_out"] + params["b_out"][0]
    x1 = x + a
    h2 = layernorm(x1, params["g2"][0], params["be2"][0])
    fc = h2 @ params["w_fc"] + params["b_fc"][0]
    act = fc * jax.nn.sigmoid(1.702 * fc)
    proj = act @ params["w_proj"] + params["b_proj"][0]
    return x1 + proj


if __name__ == "__main__":
    # Small shapes consistent with the module: seq=8, d_model=32, n_head=4.
    B, S, D, n_head = 2, 8, 32, 4
    key = jax.random.PRNGKey(0)
    ks = jax.random.split(key, 8)

    x = jax.random.normal(ks[0], (B, S, D), dtype=jnp.float32)

    # Deterministic parameter init (weights pre-transposed to (in, out)).
    params = {
        "w_qkv":  jax.random.normal(ks[1], (D, 3 * D), jnp.float32) * 0.05,
        "b_qkv":  jnp.zeros((1, 3 * D), jnp.float32),
        "w_out":  jax.random.normal(ks[2], (D, D), jnp.float32) * 0.05,
        "b_out":  jnp.zeros((1, D), jnp.float32),
        "g1":     jnp.ones((1, D), jnp.float32),
        "be1":    jnp.zeros((1, D), jnp.float32),
        "g2":     jnp.ones((1, D), jnp.float32),
        "be2":    jnp.zeros((1, D), jnp.float32),
        "w_fc":   jax.random.normal(ks[3], (D, 4 * D), jnp.float32) * 0.05,
        "b_fc":   jax.random.normal(ks[4], (1, 4 * D), jnp.float32) * 0.01,
        "w_proj": jax.random.normal(ks[5], (4 * D, D), jnp.float32) * 0.05,
        "b_proj": jnp.zeros((1, D), jnp.float32) + jax.random.normal(ks[6], (1, D), jnp.float32) * 0.01,
    }

    out = residual_attention_block(x, params, n_head)
    out = jax.block_until_ready(out)

    ref = ref_forward(x, params, n_head)
    assert out.shape == (B, S, D) and out.dtype == jnp.float32
    # bf16 MXU inputs + approx reciprocal => slightly looser tolerance vs f32 ref.
    assert jnp.allclose(out, ref, atol=3e-2, rtol=3e-2), "mismatch vs reference"

    print("KERNEL_OK")
</pallas_src>

<mosaic_0001>
module attributes {stable_mosaic.version = 11 : i64} {
  func.func @kernel(%arg0: i32, %arg1: memref<1x8x32xf32, #tpu.memory_space<vmem>>, %arg2: memref<32x96xbf16, #tpu.memory_space<vmem>>, %arg3: memref<1x96xf32, #tpu.memory_space<vmem>>, %arg4: memref<32x32xbf16, #tpu.memory_space<vmem>>, %arg5: memref<1x32xf32, #tpu.memory_space<vmem>>, %arg6: memref<1x32xf32, #tpu.memory_space<vmem>>, %arg7: memref<1x32xf32, #tpu.memory_space<vmem>>, %arg8: memref<1x32xf32, #tpu.memory_space<vmem>>, %arg9: memref<1x32xf32, #tpu.memory_space<vmem>>, %arg10: memref<32x128xbf16, #tpu.memory_space<vmem>>, %arg11: memref<1x128xf32, #tpu.memory_space<vmem>>, %arg12: memref<128x32xbf16, #tpu.memory_space<vmem>>, %arg13: memref<1x32xf32, #tpu.memory_space<vmem>>, %arg14: memref<1x8x32xf32, #tpu.memory_space<vmem>>) attributes {dimension_semantics = [#tpu.dimension_semantics<parallel>], iteration_bounds = array<i64: 2>, scalar_prefetch = 0 : i64, scratch_operands = 0 : i64, tpu.core_type = #tpu.core_type<tc>, window_params = [{transform_indices = @transform_0, window_bounds = array<i64: 1, 8, 32>}, {pipeline_mode = #tpu.pipeline_mode<synchronous>, transform_indices = @transform_1, window_bounds = array<i64: 32, 96>}, {pipeline_mode = #tpu.pipeline_mode<synchronous>, transform_indices = @transform_2, window_bounds = array<i64: 1, 96>}, {pipeline_mode = #tpu.pipeline_mode<synchronous>, transform_indices = @transform_3, window_bounds = array<i64: 32, 32>}, {pipeline_mode = #tpu.pipeline_mode<synchronous>, transform_indices = @transform_4, window_bounds = array<i64: 1, 32>}, {pipeline_mode = #tpu.pipeline_mode<synchronous>, transform_indices = @transform_5, window_bounds = array<i64: 1, 32>}, {pipeline_mode = #tpu.pipeline_mode<synchronous>, transform_indices = @transform_6, window_bounds = array<i64: 1, 32>}, {pipeline_mode = #tpu.pipeline_mode<synchronous>, transform_indices = @transform_7, window_bounds = array<i64: 1, 32>}, {pipeline_mode = #tpu.pipeline_mode<synchronous>, transform_indices = @transform_8, window_bounds = array<i64: 1, 32>}, {pipeline_mode = #tpu.pipeline_mode<synchronous>, transform_indices = @transform_9, window_bounds = array<i64: 32, 128>}, {pipeline_mode = #tpu.pipeline_mode<synchronous>, transform_indices = @transform_10, window_bounds = array<i64: 1, 128>}, {pipeline_mode = #tpu.pipeline_mode<synchronous>, transform_indices = @transform_11, window_bounds = array<i64: 128, 32>}, {pipeline_mode = #tpu.pipeline_mode<synchronous>, transform_indices = @transform_12, window_bounds = array<i64: 1, 32>}, {transform_indices = @transform_13, window_bounds = array<i64: 1, 8, 32>}]} {
    %c0 = arith.constant 0 : index
    %c0_0 = arith.constant 0 : index
    %c0_1 = arith.constant 0 : index
    %0 = vector.load %arg1[%c0, %c0_0, %c0_1] : memref<1x8x32xf32, #tpu.memory_space<vmem>>, vector<1x8x32xf32>
    %1 = vector.shape_cast %0 : vector<1x8x32xf32> to vector<8x32xf32>
    %c0_2 = arith.constant 0 : index
    %c0_3 = arith.constant 0 : index
    %2 = vector.load %arg3[%c0_2, %c0_3] : memref<1x96xf32, #tpu.memory_space<vmem>>, vector<1x96xf32>
    %3 = vector.shape_cast %2 : vector<1x96xf32> to vector<96xf32>
    %c0_4 = arith.constant 0 : index
    %c0_5 = arith.constant 0 : index
    %4 = vector.load %arg5[%c0_4, %c0_5] : memref<1x32xf32, #tpu.memory_space<vmem>>, vector<1x32xf32>
    %5 = vector.shape_cast %4 : vector<1x32xf32> to vector<32xf32>
    %c0_6 = arith.constant 0 : index
    %c0_7 = arith.constant 0 : index
    %6 = vector.load %arg6[%c0_6, %c0_7] : memref<1x32xf32, #tpu.memory_space<vmem>>, vector<1x32xf32>
    %7 = vector.shape_cast %6 : vector<1x32xf32> to vector<32xf32>
    %c0_8 = arith.constant 0 : index
    %c0_9 = arith.constant 0 : index
    %8 = vector.load %arg7[%c0_8, %c0_9] : memref<1x32xf32, #tpu.memory_space<vmem>>, vector<1x32xf32>
    %9 = vector.shape_cast %8 : vector<1x32xf32> to vector<32xf32>
    %c0_10 = arith.constant 0 : index
    %c0_11 = arith.constant 0 : index
    %10 = vector.load %arg8[%c0_10, %c0_11] : memref<1x32xf32, #tpu.memory_space<vmem>>, vector<1x32xf32>
    %11 = vector.shape_cast %10 : vector<1x32xf32> to vector<32xf32>
    %c0_12 = arith.constant 0 : index
    %c0_13 = arith.constant 0 : index
    %12 = vector.load %arg9[%c0_12, %c0_13] : memref<1x32xf32, #tpu.memory_space<vmem>>, vector<1x32xf32>
    %13 = vector.shape_cast %12 : vector<1x32xf32> to vector<32xf32>
    %c0_14 = arith.constant 0 : index
    %c0_15 = arith.constant 0 : index
    %14 = vector.load %arg11[%c0_14, %c0_15] : memref<1x128xf32, #tpu.memory_space<vmem>>, vector<1x128xf32>
    %15 = vector.shape_cast %14 : vector<1x128xf32> to vector<128xf32>
    %c0_16 = arith.constant 0 : index
    %c0_17 = arith.constant 0 : index
    %16 = vector.load %arg13[%c0_16, %c0_17] : memref<1x32xf32, #tpu.memory_space<vmem>>, vector<1x32xf32>
    %17 = vector.shape_cast %16 : vector<1x32xf32> to vector<32xf32>
    %cst = arith.constant dense<0.000000e+00> : vector<8xf32>
    %18 = vector.multi_reduction <add>, %1, %cst [1] : vector<8x32xf32> to vector<8xf32>
    %19 = vector.shape_cast %18 : vector<8xf32> to vector<8x1xf32>
    %cst_18 = arith.constant 3.200000e+01 : f32
    %20 = vector.broadcast %cst_18 : f32 to vector<8x1xf32>
    %21 = arith.divf %19, %20 : vector<8x1xf32>
    %22 = vector.broadcast %21 : vector<8x1xf32> to vector<8x32xf32>
    %23 = arith.subf %1, %22 : vector<8x32xf32>
    %24 = arith.mulf %23, %23 : vector<8x32xf32>
    %cst_19 = arith.constant dense<0.000000e+00> : vector<8xf32>
    %25 = vector.multi_reduction <add>, %24, %cst_19 [1] : vector<8x32xf32> to vector<8xf32>
    %26 = vector.shape_cast %25 : vector<8xf32> to vector<8x1xf32>
    %cst_20 = arith.constant 3.200000e+01 : f32
    %27 = vector.broadcast %cst_20 : f32 to vector<8x1xf32>
    %28 = arith.divf %26, %27 : vector<8x1xf32>
    %29 = vector.broadcast %21 : vector<8x1xf32> to vector<8x32xf32>
    %30 = arith.subf %1, %29 : vector<8x32xf32>
    %cst_21 = arith.constant 9.99999974E-6 : f32
    %31 = vector.broadcast %cst_21 : f32 to vector<8x1xf32>
    %32 = arith.addf %28, %31 : vector<8x1xf32>
    %33 = math.rsqrt %32 : vector<8x1xf32>
    %34 = vector.broadcast %33 : vector<8x1xf32> to vector<8x32xf32>
    %35 = arith.mulf %30, %34 : vector<8x32xf32>
    %36 = vector.shape_cast %7 : vector<32xf32> to vector<1x32xf32>
    %37 = vector.broadcast %36 : vector<1x32xf32> to vector<8x32xf32>
    %38 = arith.mulf %35, %37 : vector<8x32xf32>
    %39 = vector.shape_cast %9 : vector<32xf32> to vector<1x32xf32>
    %40 = vector.broadcast %39 : vector<1x32xf32> to vector<8x32xf32>
    %41 = arith.addf %38, %40 : vector<8x32xf32>
    %42 = arith.truncf %41 : vector<8x32xf32> to vector<8x32xbf16>
    %c0_22 = arith.constant 0 : index
    %c0_23 = arith.constant 0 : index
    %43 = vector.load %arg2[%c0_22, %c0_23] : memref<32x96xbf16, #tpu.memory_space<vmem>>, vector<32x96xbf16>
    %cst_24 = arith.constant dense<0.000000e+00> : vector<8x96xf32>
    %44 = tpu.matmul %42, %43, %cst_24 {dimension_numbers = #tpu.dot_dimension_numbers<[1], [0], [0], [1], [0, 0, 1, 1], [], []>} : vector<8x32xbf16>, vector<32x96xbf16>, vector<8x96xf32> -> vector<8x96xf32>
    %45 = vector.shape_cast %3 : vector<96xf32> to vector<1x96xf32>
    %46 = vector.broadcast %45 : vector<1x96xf32> to vector<8x96xf32>
    %47 = arith.addf %44, %46 : vector<8x96xf32>
    %48 = vector.extract_strided_slice %47 {offsets = [0, 0], sizes = [8, 32], strides = [1, 1]} : vector<8x96xf32> to vector<8x32xf32>
    %cst_25 = arith.constant 0.353553385 : f32
    %49 = vector.broadcast %cst_25 : f32 to vector<8x32xf32>
    %50 = arith.mulf %48, %49 : vector<8x32xf32>
    %51 = vector.shape_cast %50 : vector<8x32xf32> to vector<8x4x8xf32>
    %52 = tpu.transpose %51, [1, 0, 2] : vector<8x4x8xf32> -> vector<4x8x8xf32>
    %53 = arith.truncf %52 : vector<4x8x8xf32> to vector<4x8x8xbf16>
    %54 = vector.extract_strided_slice %47 {offsets = [0, 32], sizes = [8, 32], strides = [1, 1]} : vector<8x96xf32> to vector<8x32xf32>
    %55 = vector.shape_cast %54 : vector<8x32xf32> to vector<8x4x8xf32>
    %56 = tpu.transpose %55, [1, 0, 2] : vector<8x4x8xf32> -> vector<4x8x8xf32>
    %57 = arith.truncf %56 : vector<4x8x8xf32> to vector<4x8x8xbf16>
    %58 = vector.extract_strided_slice %47 {offsets = [0, 64], sizes = [8, 32], strides = [1, 1]} : vector<8x96xf32> to vector<8x32xf32>
    %59 = vector.shape_cast %58 : vector<8x32xf32> to vector<8x4x8xf32>
    %60 = tpu.transpose %59, [1, 0, 2] : vector<8x4x8xf32> -> vector<4x8x8xf32>
    %61 = arith.truncf %60 : vector<4x8x8xf32> to vector<4x8x8xbf16>
    "tpu.trace_start"() <{level = 10 : i32, message = "hqd,hkd->hqk"}> : () -> ()
    %cst_26 = arith.constant dense<0.000000e+00> : vector<4x8x8xf32>
    %62 = tpu.matmul %53, %57, %cst_26 {dimension_numbers = #tpu.dot_dimension_numbers<[2], [2], [1], [1], [0, 0, 0, 1, 1, 1], [0], [0]>} : vector<4x8x8xbf16>, vector<4x8x8xbf16>, vector<4x8x8xf32> -> vector<4x8x8xf32>
    "tpu.trace_stop"() : () -> ()
    %cst_27 = arith.constant dense<0xFF800000> : vector<4x8xf32>
    %63 = vector.multi_reduction <maximumf>, %62, %cst_27 [2] : vector<4x8x8xf32> to vector<4x8xf32>
    %64 = vector.shape_cast %63 : vector<4x8xf32> to vector<4x8x1xf32>
    %65 = vector.broadcast %64 : vector<4x8x1xf32> to vector<4x8x8xf32>
    %66 = arith.subf %62, %65 : vector<4x8x8xf32>
    %67 = math.exp %66 : vector<4x8x8xf32>
    %cst_28 = arith.constant dense<0.000000e+00> : vector<4x8xf32>
    %68 = vector.multi_reduction <add>, %67, %cst_28 [2] : vector<4x8x8xf32> to vector<4x8xf32>
    %69 = vector.shape_cast %68 : vector<4x8xf32> to vector<4x8x1xf32>
    %70 = tpu.reciprocal %69 {approx = true} : vector<4x8x1xf32> -> vector<4x8x1xf32>
    %71 = vector.broadcast %70 : vector<4x8x1xf32> to vector<4x8x8xf32>
    %72 = arith.mulf %67, %71 : vector<4x8x8xf32>
    %73 = arith.truncf %72 : vector<4x8x8xf32> to vector<4x8x8xbf16>
    "tpu.trace_start"() <{level = 10 : i32, message = "hqk,hkd->hqd"}> : () -> ()
    %cst_29 = arith.constant dense<0.000000e+00> : vector<4x8x8xf32>
    %74 = tpu.matmul %73, %61, %cst_29 {dimension_numbers = #tpu.dot_dimension_numbers<[2], [1], [1], [2], [0, 0, 0, 1, 1, 2], [0], [0]>} : vector<4x8x8xbf16>, vector<4x8x8xbf16>, vector<4x8x8xf32> -> vector<4x8x8xf32>
    "tpu.trace_stop"() : () -> ()
    %75 = tpu.transpose %74, [1, 0, 2] : vector<4x8x8xf32> -> vector<8x4x8xf32>
    %76 = vector.shape_cast %75 : vector<8x4x8xf32> to vector<8x32xf32>
    %77 = arith.truncf %76 : vector<8x32xf32> to vector<8x32xbf16>
    %c0_30 = arith.constant 0 : index
    %c0_31 = arith.constant 0 : index
    %78 = vector.load %arg4[%c0_30, %c0_31] : memref<32x32xbf16, #tpu.memory_space<vmem>>, vector<32x32xbf16>
    %cst_32 = arith.constant dense<0.000000e+00> : vector<8x32xf32>
    %79 = tpu.matmul %77, %78, %cst_32 {dimension_numbers = #tpu.dot_dimension_numbers<[1], [0], [0], [1], [0, 0, 1, 1], [], []>} : vector<8x32xbf16>, vector<32x32xbf16>, vector<8x32xf32> -> vector<8x32xf32>
    %80 = vector.shape_cast %5 : vector<32xf32> to vector<1x32xf32>
    %81 = vector.broadcast %80 : vector<1x32xf32> to vector<8x32xf32>
    %82 = arith.addf %79, %81 : vector<8x32xf32>
    %83 = arith.addf %1, %82 : vector<8x32xf32>
    %cst_33 = arith.constant dense<0.000000e+00> : vector<8xf32>
    %84 = vector.multi_reduction <add>, %83, %cst_33 [1] : vector<8x32xf32> to vector<8xf32>
    %85 = vector.shape_cast %84 : vector<8xf32> to vector<8x1xf32>
    %cst_34 = arith.constant 3.200000e+01 : f32
    %86 = vector.broadcast %cst_34 : f32 to vector<8x1xf32>
    %87 = arith.divf %85, %86 : vector<8x1xf32>
    %88 = vector.broadcast %87 : vector<8x1xf32> to vector<8x32xf32>
    %89 = arith.subf %83, %88 : vector<8x32xf32>
    %90 = arith.mulf %89, %89 : vector<8x32xf32>
    %cst_35 = arith.constant dense<0.000000e+00> : vector<8xf32>
    %91 = vector.multi_reduction <add>, %90, %cst_35 [1] : vector<8x32xf32> to vector<8xf32>
    %92 = vector.shape_cast %91 : vector<8xf32> to vector<8x1xf32>
    %cst_36 = arith.constant 3.200000e+01 : f32
    %93 = vector.broadcast %cst_36 : f32 to vector<8x1xf32>
    %94 = arith.divf %92, %93 : vector<8x1xf32>
    %95 = vector.broadcast %87 : vector<8x1xf32> to vector<8x32xf32>
    %96 = arith.subf %83, %95 : vector<8x32xf32>
    %cst_37 = arith.constant 9.99999974E-6 : f32
    %97 = vector.broadcast %cst_37 : f32 to vector<8x1xf32>
    %98 = arith.addf %94, %97 : vector<8x1xf32>
    %99 = math.rsqrt %98 : vector<8x1xf32>
    %100 = vector.broadcast %99 : vector<8x1xf32> to vector<8x32xf32>
    %101 = arith.mulf %96, %100 : vector<8x32xf32>
    %102 = vector.shape_cast %11 : vector<32xf32> to vector<1x32xf32>
    %103 = vector.broadcast %102 : vector<1x32xf32> to vector<8x32xf32>
    %104 = arith.mulf %101, %103 : vector<8x32xf32>
    %105 = vector.shape_cast %13 : vector<32xf32> to vector<1x32xf32>
    %106 = vector.broadcast %105 : vector<1x32xf32> to vector<8x32xf32>
    %107 = arith.addf %104, %106 : vector<8x32xf32>
    %108 = arith.truncf %107 : vector<8x32xf32> to vector<8x32xbf16>
    %c0_38 = arith.constant 0 : index
    %c0_39 = arith.constant 0 : index
    %109 = vector.load %arg10[%c0_38, %c0_39] : memref<32x128xbf16, #tpu.memory_space<vmem>>, vector<32x128xbf16>
    %cst_40 = arith.constant dense<0.000000e+00> : vector<8x128xf32>
    %110 = tpu.matmul %108, %109, %cst_40 {dimension_numbers = #tpu.dot_dimension_numbers<[1], [0], [0], [1], [0, 0, 1, 1], [], []>} : vector<8x32xbf16>, vector<32x128xbf16>, vector<8x128xf32> -> vector<8x128xf32>
    %111 = vector.shape_cast %15 : vector<128xf32> to vector<1x128xf32>
    %112 = vector.broadcast %111 : vector<1x128xf32> to vector<8x128xf32>
    %113 = arith.addf %110, %112 : vector<8x128xf32>
    %cst_41 = arith.constant 1.702000e+00 : f32
    %114 = vector.broadcast %cst_41 : f32 to vector<8x128xf32>
    %115 = arith.mulf %114, %113 : vector<8x128xf32>
    %116 = arith.negf %115 : vector<8x128xf32>
    %117 = math.exp %116 : vector<8x128xf32>
    %cst_42 = arith.constant 1.000000e+00 : f32
    %118 = vector.broadcast %cst_42 : f32 to vector<8x128xf32>
    %119 = arith.addf %118, %117 : vector<8x128xf32>
    %120 = arith.divf %118, %119 : vector<8x128xf32>
    %121 = arith.mulf %113, %120 : vector<8x128xf32>
    %122 = arith.truncf %121 : vector<8x128xf32> to vector<8x128xbf16>
    %c0_43 = arith.constant 0 : index
    %c0_44 = arith.constant 0 : index
    %123 = vector.load %arg12[%c0_43, %c0_44] : memref<128x32xbf16, #tpu.memory_space<vmem>>, vector<128x32xbf16>
    %cst_45 = arith.constant dense<0.000000e+00> : vector<8x32xf32>
    %124 = tpu.matmul %122, %123, %cst_45 {dimension_numbers = #tpu.dot_dimension_numbers<[1], [0], [0], [1], [0, 0, 1, 1], [], []>} : vector<8x128xbf16>, vector<128x32xbf16>, vector<8x32xf32> -> vector<8x32xf32>
    %125 = vector.shape_cast %17 : vector<32xf32> to vector<1x32xf32>
    %126 = vector.broadcast %125 : vector<1x32xf32> to vector<8x32xf32>
    %127 = arith.addf %124, %126 : vector<8x32xf32>
    %128 = arith.addf %83, %127 : vector<8x32xf32>
    %c0_46 = arith.constant 0 : index
    %c0_47 = arith.constant 0 : index
    %c0_48 = arith.constant 0 : index
    %129 = vector.load %arg14[%c0_46, %c0_47, %c0_48] : memref<1x8x32xf32, #tpu.memory_space<vmem>>, vector<1x8x32xf32>
    %130 = vector.shape_cast %129 : vector<1x8x32xf32> to vector<8x32xf32>
    %131 = vector.shape_cast %128 : vector<8x32xf32> to vector<1x8x32xf32>
    tpu.vector_store %arg14[%c0_46, %c0_47, %c0_48], %131 {strides = array<i32>} : memref<1x8x32xf32, #tpu.memory_space<vmem>>, vector<1x8x32xf32>,
    return
  }
  func.func @transform_0(%arg0: i32) -> (i32, i32, i32) {
    %c0_i32 = arith.constant 0 : i32
    %c0_i32_0 = arith.constant 0 : i32
    %c0_i32_1 = arith.constant 0 : i32
    return %arg0, %c0_i32, %c0_i32_0 : i32, i32, i32
  }
  func.func @transform_1(%arg0: i32) -> (i32, i32) {
    %c0_i32 = arith.constant 0 : i32
    %c0_i32_0 = arith.constant 0 : i32
    %c0_i32_1 = arith.constant 0 : i32
    return %c0_i32, %c0_i32_0 : i32, i32
  }
  func.func @transform_2(%arg0: i32) -> (i32, i32) {
    %c0_i32 = arith.constant 0 : i32
    %c0_i32_0 = arith.constant 0 : i32
    %c0_i32_1 = arith.constant 0 : i32
    return %c0_i32, %c0_i32_0 : i32, i32
  }
  func.func @transform_3(%arg0: i32) -> (i32, i32) {
    %c0_i32 = arith.constant 0 : i32
    %c0_i32_0 = arith.constant 0 : i32
    %c0_i32_1 = arith.constant 0 : i32
    return %c0_i32, %c0_i32_0 : i32, i32
  }
  func.func @transform_4(%arg0: i32) -> (i32, i32) {
    %c0_i32 = arith.constant 0 : i32
    %c0_i32_0 = arith.constant 0 : i32
    %c0_i32_1 = arith.constant 0 : i32
    return %c0_i32, %c0_i32_0 : i32, i32
  }
  func.func @transform_5(%arg0: i32) -> (i32, i32) {
    %c0_i32 = arith.constant 0 : i32
    %c0_i32_0 = arith.constant 0 : i32
    %c0_i32_1 = arith.constant 0 : i32
    return %c0_i32, %c0_i32_0 : i32, i32
  }
  func.func @transform_6(%arg0: i32) -> (i32, i32) {
    %c0_i32 = arith.constant 0 : i32
    %c0_i32_0 = arith.constant 0 : i32
    %c0_i32_1 = arith.constant 0 : i32
    return %c0_i32, %c0_i32_0 : i32, i32
  }
  func.func @transform_7(%arg0: i32) -> (i32, i32) {
    %c0_i32 = arith.constant 0 : i32
    %c0_i32_0 = arith.constant 0 : i32
    %c0_i32_1 = arith.constant 0 : i32
    return %c0_i32, %c0_i32_0 : i32, i32
  }
  func.func @transform_8(%arg0: i32) -> (i32, i32) {
    %c0_i32 = arith.constant 0 : i32
    %c0_i32_0 = arith.constant 0 : i32
    %c0_i32_1 = arith.constant 0 : i32
    return %c0_i32, %c0_i32_0 : i32, i32
  }
  func.func @transform_9(%arg0: i32) -> (i32, i32) {
    %c0_i32 = arith.constant 0 : i32
    %c0_i32_0 = arith.constant 0 : i32
    %c0_i32_1 = arith.constant 0 : i32
    return %c0_i32, %c0_i32_0 : i32, i32
  }
  func.func @transform_10(%arg0: i32) -> (i32, i32) {
    %c0_i32 = arith.constant 0 : i32
    %c0_i32_0 = arith.constant 0 : i32
    %c0_i32_1 = arith.constant 0 : i32
    return %c0_i32, %c0_i32_0 : i32, i32
  }
  func.func @transform_11(%arg0: i32) -> (i32, i32) {
    %c0_i32 = arith.constant 0 : i32
    %c0_i32_0 = arith.constant 0 : i32
    %c0_i32_1 = arith.constant 0 : i32
    return %c0_i32, %c0_i32_0 : i32, i32
  }
  func.func @transform_12(%arg0: i32) -> (i32, i32) {
    %c0_i32 = arith.constant 0 : i32
    %c0_i32_0 = arith.constant 0 : i32
    %c0_i32_1 = arith.constant 0 : i32
    return %c0_i32, %c0_i32_0 : i32, i32
  }
  func.func @transform_13(%arg0: i32) -> (i32, i32, i32) {
    %c0_i32 = arith.constant 0 : i32
    %c0_i32_0 = arith.constant 0 : i32
    %c0_i32_1 = arith.constant 0 : i32
    return %arg0, %c0_i32, %c0_i32_0 : i32, i32, i32
  }
}

</mosaic_0001>

<llo_original>
// kernel: tpu_custom_call.1
$region0: #{tpu_custom_call.1}
  #allocation0 [shape = 'u32[]', space=smem, size = 0x4, offset = 0x4, fixed_abs, tag = 'smem constant byte address 0x4 - core index']
  #allocation1 [shape = 'u32[144,128]{1,0:T(1,128)}', space=vmem, size = 0x12000, scoped, tag = 'internal scratch']
  %s0 = inlined_call_operand.vmem [shape: f32[2,8,32], index: 0, kind: input, shape index: {}]
  %s1 = inlined_call_operand.vmem [shape: bf16[32,96], index: 1, kind: input, shape index: {}]
  %s2 = inlined_call_operand.vmem [shape: f32[1,96], index: 2, kind: input, shape index: {}]
  %s3 = inlined_call_operand.vmem [shape: bf16[32,32], index: 3, kind: input, shape index: {}]
  %s4 = inlined_call_operand.vmem [shape: f32[1,32], index: 4, kind: input, shape index: {}]
  %s5 = inlined_call_operand.vmem [shape: f32[1,32], index: 5, kind: input, shape index: {}]
  %s6 = inlined_call_operand.vmem [shape: f32[1,32], index: 6, kind: input, shape index: {}]
  %s7 = inlined_call_operand.vmem [shape: f32[1,32], index: 7, kind: input, shape index: {}]
  %s8 = inlined_call_operand.vmem [shape: f32[1,32], index: 8, kind: input, shape index: {}]
  %s9 = inlined_call_operand.vmem [shape: bf16[32,128], index: 9, kind: input, shape index: {}]
  %s10 = inlined_call_operand.vmem [shape: f32[1,128], index: 10, kind: input, shape index: {}]
  %s11 = inlined_call_operand.vmem [shape: bf16[128,32], index: 11, kind: input, shape index: {}]
  %s12 = inlined_call_operand.vmem [shape: f32[1,32], index: 12, kind: input, shape index: {}]
  %s13 = inlined_call_operand.hbm [shape: f32[2,8,32], index: 13, kind: output, shape index: {}]
  %s14 = sld [smem:[#allocation0]]
  $region85: #{tpu_custom_call.1} parent=0
    _
  %s16 = ssub.s32 1, %s14
  %s17 = scalar_select 0, %s16, %s14
  $region1: #{tpu_custom_call.1} parent=0
    #allocation2 [shape = 'u8[8192]{0}', space=vmem, size = 0x2000, scoped, tag = 'output window, operand 0']
    #allocation3 [shape = 's32[2]{0}', space=sflag, size = 0x8, scoped, tag = 'scoped memory for tpu_custom_call.1']
    %18 = vsyncpa [#allocation3], 0
    %s19 = scalar_lea.sflag [#allocation3], 1
    %20 = vsyncpa %s19, 0
    loop: start=0, step=1, limit=4
    $region2: #{tpu_custom_call.1} parent=1 // loop_pre_header
      _
    $region3: #{tpu_custom_call.1} parent=1 // loop_header
      %s22 = sphi 0, %s26
      %p23 = scmp.ge.s32.totalorder %s22, 4
      %s32 = sphi 0, %s34
      %s35 = sphi 0, %s32
      %s36 = sphi 0, %s35
      %s52 = sphi 0, %s36
      %s56 = sphi 0, %s56
      %s58 = sphi 0, %s56
      %s59 = sphi 0, %s58
      %s73 = sphi 0, %s59
      %s77 = sphi 0, %s77
      %s79 = sphi 0, %s77
      %s80 = sphi 0, %s79
      %s94 = sphi 0, %s80
      %s98 = sphi 0, %s98
      %s100 = sphi 0, %s98
      %s101 = sphi 0, %s100
      %s115 = sphi 0, %s101
      %s119 = sphi 0, %s119
      %s121 = sphi 0, %s119
      %s122 = sphi 0, %s121
      %s136 = sphi 0, %s122
      %s140 = sphi 0, %s140
      %s142 = sphi 0, %s140
      %s143 = sphi 0, %s142
      %s157 = sphi 0, %s143
      %s161 = sphi 0, %s161
      %s163 = sphi 0, %s161
      %s164 = sphi 0, %s163
      %s178 = sphi 0, %s164
      %s182 = sphi 0, %s182
      %s184 = sphi 0, %s182
      %s185 = sphi 0, %s184
      %s199 = sphi 0, %s185
      %s203 = sphi 0, %s203
      %s205 = sphi 0, %s203
      %s206 = sphi 0, %s205
      %s220 = sphi 0, %s206
      %s224 = sphi 0, %s224
      %s226 = sphi 0, %s224
      %s227 = sphi 0, %s226
      %s241 = sphi 0, %s227
      %s245 = sphi 0, %s245
      %s247 = sphi 0, %s245
      %s248 = sphi 0, %s247
      %s262 = sphi 0, %s248
      %s266 = sphi 0, %s266
      %s268 = sphi 0, %s266
      %s269 = sphi 0, %s268
      %s283 = sphi 0, %s269
      %s287 = sphi 0, %s287
      %s289 = sphi 0, %s287
      %s290 = sphi 0, %s289
      %s304 = sphi 0, %s290
      %s310 = sphi 0, %s312
      %s313 = sphi 0, %s310
      %s314 = sphi 0, %s313
      %s330 = sphi 0, %s314
    $region4: #{tpu_custom_call.1} parent=1 // loop_header_branch
      %25 = sbr.rel (%p23) target = $region8
    $region5: #{tpu_custom_call.1} parent=1 // loop_body
      %s27 = ssub.s32 %s22, 1
      %s28 = ssub.s32 %s22, 2
      %s29 = sadd.s32 %s22, 1
      %s30 = ssub.s32 %s22, %s29
      %p31 = scmp.eq.s32.totalorder %s30, 0
      %s33 = sadd.s32 %s32, 1
      %s34 = scalar_select %p31, %s32, %s33
      %p37 = pneg %p31
      %p38 = scmp.eq.s32.totalorder %s22, 1
      %p39 = por %p37, %p38
      %p40 = scmp.ne.s32.totalorder %s32, %s35
      %p41 = scmp.eq.s32.totalorder %s22, 0
      %p42 = por %p40, %p41
      %p43 = scmp.ne.s32.totalorder %s32, %s35
      %p44 = scmp.eq.s32.totalorder %s27, 1
      %p45 = por %p43, %p44
      %p46 = scmp.ne.s32.totalorder %s35, %s36
      %p47 = scmp.eq.s32.totalorder %s27, 0
      %p48 = por %p46, %p47
      %p49 = scmp.ne.s32.totalorder %s35, %s36
      %p50 = scmp.eq.s32.totalorder %s28, 1
      %p51 = por %p49, %p50
      %p53 = scmp.ne.s32.totalorder %s36, %s52
      %p54 = scmp.eq.s32.totalorder %s28, 0
      %p55 = por %p53, %p54
      %s57 = sadd.s32 %s56, 1
      %p60 = scmp.eq.s32.totalorder %s22, 1
      %p61 = scmp.ne.s32.totalorder %s56, %s58
      %p62 = scmp.eq.s32.totalorder %s22, 0
      %p63 = por %p61, %p62
      %p64 = scmp.ne.s32.totalorder %s56, %s58
      %p65 = scmp.eq.s32.totalorder %s27, 1
      %p66 = por %p64, %p65
      %p67 = scmp.ne.s32.totalorder %s58, %s59
      %p68 = scmp.eq.s32.totalorder %s27, 0
      %p69 = por %p67, %p68
      %p70 = scmp.ne.s32.totalorder %s58, %s59
      %p71 = scmp.eq.s32.totalorder %s28, 1
      %p72 = por %p70, %p71
      %p74 = scmp.ne.s32.totalorder %s59, %s73
      %p75 = scmp.eq.s32.totalorder %s28, 0
      %p76 = por %p74, %p75
      %s78 = sadd.s32 %s77, 1
      %p81 = scmp.eq.s32.totalorder %s22, 1
      %p82 = scmp.ne.s32.totalorder %s77, %s79
      %p83 = scmp.eq.s32.totalorder %s22, 0
      %p84 = por %p82, %p83
      %p85 = scmp.ne.s32.totalorder %s77, %s79
      %p86 = scmp.eq.s32.totalorder %s27, 1
      %p87 = por %p85, %p86
      %p88 = scmp.ne.s32.totalorder %s79, %s80
      %p89 = scmp.eq.s32.totalorder %s27, 0
      %p90 = por %p88, %p89
      %p91 = scmp.ne.s32.totalorder %s79, %s80
      %p92 = scmp.eq.s32.totalorder %s28, 1
      %p93 = por %p91, %p92
      %p95 = scmp.ne.s32.totalorder %s80, %s94
      %p96 = scmp.eq.s32.totalorder %s28, 0
      %p97 = por %p95, %p96
      %s99 = sadd.s32 %s98, 1
      %p102 = scmp.eq.s32.totalorder %s22, 1
      %p103 = scmp.ne.s32.totalorder %s98, %s100
      %p104 = scmp.eq.s32.totalorder %s22, 0
      %p105 = por %p103, %p104
      %p106 = scmp.ne.s32.totalorder %s98, %s100
      %p107 = scmp.eq.s32.totalorder %s27, 1
      %p108 = por %p106, %p107
      %p109 = scmp.ne.s32.totalorder %s100, %s101
      %p110 = scmp.eq.s32.totalorder %s27, 0
      %p111 = por %p109, %p110
      %p112 = scmp.ne.s32.totalorder %s100, %s101
      %p113 = scmp.eq.s32.totalorder %s28, 1
      %p114 = por %p112, %p113
      %p116 = scmp.ne.s32.totalorder %s101, %s115
      %p117 = scmp.eq.s32.totalorder %s28, 0
      %p118 = por %p116, %p117
      %s120 = sadd.s32 %s119, 1
      %p123 = scmp.eq.s32.totalorder %s22, 1
      %p124 = scmp.ne.s32.totalorder %s119, %s121
      %p125 = scmp.eq.s32.totalorder %s22, 0
      %p126 = por %p124, %p125
      %p127 = scmp.ne.s32.totalorder %s119, %s121
      %p128 = scmp.eq.s32.totalorder %s27, 1
      %p129 = por %p127, %p128
      %p130 = scmp.ne.s32.totalorder %s121, %s122
      %p131 = scmp.eq.s32.totalorder %s27, 0
      %p132 = por %p130, %p131
      %p133 = scmp.ne.s32.totalorder %s121, %s122
      %p134 = scmp.eq.s32.totalorder %s28, 1
      %p135 = por %p133, %p134
      %p137 = scmp.ne.s32.totalorder %s122, %s136
      %p138 = scmp.eq.s32.totalorder %s28, 0
      %p139 = por %p137, %p138
      %s141 = sadd.s32 %s140, 1
      %p144 = scmp.eq.s32.totalorder %s22, 1
      %p145 = scmp.ne.s32.totalorder %s140, %s142
      %p146 = scmp.eq.s32.totalorder %s22, 0
      %p147 = por %p145, %p146
      %p148 = scmp.ne.s32.totalorder %s140, %s142
      %p149 = scmp.eq.s32.totalorder %s27, 1
      %p150 = por %p148, %p149
      %p151 = scmp.ne.s32.totalorder %s142, %s143
      %p152 = scmp.eq.s32.totalorder %s27, 0
      %p153 = por %p151, %p152
      %p154 = scmp.ne.s32.totalorder %s142, %s143
      %p155 = scmp.eq.s32.totalorder %s28, 1
      %p156 = por %p154, %p155
      %p158 = scmp.ne.s32.totalorder %s143, %s157
      %p159 = scmp.eq.s32.totalorder %s28, 0
      %p160 = por %p158, %p159
      %s162 = sadd.s32 %s161, 1
      %p165 = scmp.eq.s32.totalorder %s22, 1
      %p166 = scmp.ne.s32.totalorder %s161, %s163
      %p167 = scmp.eq.s32.totalorder %s22, 0
      %p168 = por %p166, %p167
      %p169 = scmp.ne.s32.totalorder %s161, %s163
      %p170 = scmp.eq.s32.totalorder %s27, 1
      %p171 = por %p169, %p170
      %p172 = scmp.ne.s32.totalorder %s163, %s164
      %p173 = scmp.eq.s32.totalorder %s27, 0
      %p174 = por %p172, %p173
      %p175 = scmp.ne.s32.totalorder %s163, %s164
      %p176 = scmp.eq.s32.totalorder %s28, 1
      %p177 = por %p175, %p176
      %p179 = scmp.ne.s32.totalorder %s164, %s178
      %p180 = scmp.eq.s32.totalorder %s28, 0
      %p181 = por %p179, %p180
      %s183 = sadd.s32 %s182, 1
      %p186 = scmp.eq.s32.totalorder %s22, 1
      %p187 = scmp.ne.s32.totalorder %s182, %s184
      %p188 = scmp.eq.s32.totalorder %s22, 0
      %p189 = por %p187, %p188
      %p190 = scmp.ne.s32.totalorder %s182, %s184
      %p191 = scmp.eq.s32.totalorder %s27, 1
      %p192 = por %p190, %p191
      %p193 = scmp.ne.s32.totalorder %s184, %s185
      %p194 = scmp.eq.s32.totalorder %s27, 0
      %p195 = por %p193, %p194
      %p196 = scmp.ne.s32.totalorder %s184, %s185
      %p197 = scmp.eq.s32.totalorder %s28, 1
      %p198 = por %p196, %p197
      %p200 = scmp.ne.s32.totalorder %s185, %s199
      %p201 = scmp.eq.s32.totalorder %s28, 0
      %p202 = por %p200, %p201
      %s204 = sadd.s32 %s203, 1
      %p207 = scmp.eq.s32.totalorder %s22, 1
      %p208 = scmp.ne.s32.totalorder %s203, %s205
      %p209 = scmp.eq.s32.totalorder %s22, 0
      %p210 = por %p208, %p209
      %p211 = scmp.ne.s32.totalorder %s203, %s205
      %p212 = scmp.eq.s32.totalorder %s27, 1
      %p213 = por %p211, %p212
      %p214 = scmp.ne.s32.totalorder %s205, %s206
      %p215 = scmp.eq.s32.totalorder %s27, 0
      %p216 = por %p214, %p215
      %p217 = scmp.ne.s32.totalorder %s205, %s206
      %p218 = scmp.eq.s32.totalorder %s28, 1
      %p219 = por %p217, %p218
      %p221 = scmp.ne.s32.totalorder %s206, %s220
      %p222 = scmp.eq.s32.totalorder %s28, 0
      %p223 = por %p221, %p222
      %s225 = sadd.s32 %s224, 1
      %p228 = scmp.eq.s32.totalorder %s22, 1
      %p229 = scmp.ne.s32.totalorder %s224, %s226
      %p230 = scmp.eq.s32.totalorder %s22, 0
      %p231 = por %p229, %p230
      %p232 = scmp.ne.s32.totalorder %s224, %s226
      %p233 = scmp.eq.s32.totalorder %s27, 1
      %p234 = por %p232, %p233
      %p235 = scmp.ne.s32.totalorder %s226, %s227
      %p236 = scmp.eq.s32.totalorder %s27, 0
      %p237 = por %p235, %p236
      %p238 = scmp.ne.s32.totalorder %s226, %s227
      %p239 = scmp.eq.s32.totalorder %s28, 1
      %p240 = por %p238, %p239
      %p242 = scmp.ne.s32.totalorder %s227, %s241
      %p243 = scmp.eq.s32.totalorder %s28, 0
      %p244 = por %p242, %p243
      %s246 = sadd.s32 %s245, 1
      %p249 = scmp.eq.s32.totalorder %s22, 1
      %p250 = scmp.ne.s32.totalorder %s245, %s247
      %p251 = scmp.eq.s32.totalorder %s22, 0
      %p252 = por %p250, %p251
      %p253 = scmp.ne.s32.totalorder %s245, %s247
      %p254 = scmp.eq.s32.totalorder %s27, 1
      %p255 = por %p253, %p254
      %p256 = scmp.ne.s32.totalorder %s247, %s248
      %p257 = scmp.eq.s32.totalorder %s27, 0
      %p258 = por %p256, %p257
      %p259 = scmp.ne.s32.totalorder %s247, %s248
      %p260 = scmp.eq.s32.totalorder %s28, 1
      %p261 = por %p259, %p260
      %p263 = scmp.ne.s32.totalorder %s248, %s262
      %p264 = scmp.eq.s32.totalorder %s28, 0
      %p265 = por %p263, %p264
      %s267 = sadd.s32 %s266, 1
      %p270 = scmp.eq.s32.totalorder %s22, 1
      %p271 = scmp.ne.s32.totalorder %s266, %s268
      %p272 = scmp.eq.s32.totalorder %s22, 0
      %p273 = por %p271, %p272
      %p274 = scmp.ne.s32.totalorder %s266, %s268
      %p275 = scmp.eq.s32.totalorder %s27, 1
      %p276 = por %p274, %p275
      %p277 = scmp.ne.s32.totalorder %s268, %s269
      %p278 = scmp.eq.s32.totalorder %s27, 0
      %p279 = por %p277, %p278
      %p280 = scmp.ne.s32.totalorder %s268, %s269
      %p281 = scmp.eq.s32.totalorder %s28, 1
      %p282 = por %p280, %p281
      %p284 = scmp.ne.s32.totalorder %s269, %s283
      %p285 = scmp.eq.s32.totalorder %s28, 0
      %p286 = por %p284, %p285
      %s288 = sadd.s32 %s287, 1
      %p291 = scmp.eq.s32.totalorder %s22, 1
      %p292 = scmp.ne.s32.totalorder %s287, %s289
      %p293 = scmp.eq.s32.totalorder %s22, 0
      %p294 = por %p292, %p293
      %p295 = scmp.ne.s32.totalorder %s287, %s289
      %p296 = scmp.eq.s32.totalorder %s27, 1
      %p297 = por %p295, %p296
      %p298 = scmp.ne.s32.totalorder %s289, %s290
      %p299 = scmp.eq.s32.totalorder %s27, 0
      %p300 = por %p298, %p299
      %p301 = scmp.ne.s32.totalorder %s289, %s290
      %p302 = scmp.eq.s32.totalorder %s28, 1
      %p303 = por %p301, %p302
      %p305 = scmp.ne.s32.totalorder %s290, %s304
      %p306 = scmp.eq.s32.totalorder %s28, 0
      %p307 = por %p305, %p306
      %s308 = ssub.s32 %s22, %s29
      %p309 = scmp.eq.s32.totalorder %s308, 0
      %s311 = sadd.s32 %s310, 1
      %s312 = scalar_select %p309, %s310, %s311
      %p315 = pneg %p309
      %p316 = scmp.eq.s32.totalorder %s22, 1
      %p317 = por %p315, %p316
      %p318 = scmp.ne.s32.totalorder %s310, %s313
      %p319 = scmp.eq.s32.totalorder %s22, 0
      %p320 = por %p318, %p319
      %p321 = scmp.ne.s32.totalorder %s310, %s313
      %p322 = scmp.eq.s32.totalorder %s27, 1
      %p323 = por %p321, %p322
      %p324 = scmp.ne.s32.totalorder %s313, %s314
      %p325 = scmp.eq.s32.totalorder %s27, 0
      %p326 = por %p324, %p325
      %p327 = scmp.ne.s32.totalorder %s313, %s314
      %p328 = scmp.eq.s32.totalorder %s28, 1
      %p329 = por %p327, %p328
      %p331 = scmp.ne.s32.totalorder %s314, %s330
      %p332 = scmp.eq.s32.totalorder %s28, 0
      %p333 = por %p331, %p332
      %p334 = scmp.le.s32.totalorder 1, %s22
      %p335 = scmp.lt.s32.totalorder %s22, 3
      %p336 = pnand %p334, %p335
      %p337 = pneg %p336
      // Predicated region
      $region9: #{tpu_custom_call.1} parent=5 // pred_check
        _
      $region10: #{tpu_custom_call.1} parent=5 // pred_check_branch
        %339 = sbr.rel (%p336) target = $region12
      $region11: #{tpu_custom_call.1} parent=5 // pred_region
        %s340 = ssub.s32 %s22, 1
        // Predicated region
        $region13: #{tpu_custom_call.1} parent=11 // pred_check
          %p341 = pneg %p69
        $region14: #{tpu_custom_call.1} parent=11 // pred_check_branch
          %343 = sbr.rel (%p341) target = $region16
        $region15: #{tpu_custom_call.1} parent=11 // pred_region
          _
        $region16: #{tpu_custom_call.1} parent=11 // pred_fallthru
          _
        // Predicated region
        $region17: #{tpu_custom_call.1} parent=11 // pred_check
          %p344 = pneg %p90
        $region18: #{tpu_custom_call.1} parent=11 // pred_check_branch
          %346 = sbr.rel (%p344) target = $region20
        $region19: #{tpu_custom_call.1} parent=11 // pred_region
          _
        $region20: #{tpu_custom_call.1} parent=11 // pred_fallthru
          _
        // Predicated region
        $region21: #{tpu_custom_call.1} parent=11 // pred_check
          %p347 = pneg %p111
        $region22: #{tpu_custom_call.1} parent=11 // pred_check_branch
          %349 = sbr.rel (%p347) target = $region24
        $region23: #{tpu_custom_call.1} parent=11 // pred_region
          _
        $region24: #{tpu_custom_call.1} parent=11 // pred_fallthru
          _
        // Predicated region
        $region25: #{tpu_custom_call.1} parent=11 // pred_check
          %p350 = pneg %p132
        $region26: #{tpu_custom_call.1} parent=11 // pred_check_branch
          %352 = sbr.rel (%p350) target = $region28
        $region27: #{tpu_custom_call.1} parent=11 // pred_region
          _
        $region28: #{tpu_custom_call.1} parent=11 // pred_fallthru
          _
        // Predicated region
        $region29: #{tpu_custom_call.1} parent=11 // pred_check
          %p353 = pneg %p153
        $region30: #{tpu_custom_call.1} parent=11 // pred_check_branch
          %355 = sbr.rel (%p353) target = $region32
        $region31: #{tpu_custom_call.1} parent=11 // pred_region
          _
        $region32: #{tpu_custom_call.1} parent=11 // pred_fallthru
          _
        // Predicated region
        $region33: #{tpu_custom_call.1} parent=11 // pred_check
          %p356 = pneg %p174
        $region34: #{tpu_custom_call.1} parent=11 // pred_check_branch
          %358 = sbr.rel (%p356) target = $region36
        $region35: #{tpu_custom_call.1} parent=11 // pred_region
          _
        $region36: #{tpu_custom_call.1} parent=11 // pred_fallthru
          _
        // Predicated region
        $region37: #{tpu_custom_call.1} parent=11 // pred_check
          %p359 = pneg %p195
        $region38: #{tpu_custom_call.1} parent=11 // pred_check_branch
          %361 = sbr.rel (%p359) target = $region40
        $region39: #{tpu_custom_call.1} parent=11 // pred_region
          _
        $region40: #{tpu_custom_call.1} parent=11 // pred_fallthru
          _
        // Predicated region
        $region41: #{tpu_custom_call.1} parent=11 // pred_check
          %p362 = pneg %p216
        $region42: #{tpu_custom_call.1} parent=11 // pred_check_branch
          %364 = sbr.rel (%p362) target = $region44
        $region43: #{tpu_custom_call.1} parent=11 // pred_region
          _
        $region44: #{tpu_custom_call.1} parent=11 // pred_fallthru
          _
        // Predicated region
        $region45: #{tpu_custom_call.1} parent=11 // pred_check
          %p365 = pneg %p237
        $region46: #{tpu_custom_call.1} parent=11 // pred_check_branch
          %367 = sbr.rel (%p365) target = $region48
        $region47: #{tpu_custom_call.1} parent=11 // pred_region
          _
        $region48: #{tpu_custom_call.1} parent=11 // pred_fallthru
          _
        // Predicated region
        $region49: #{tpu_custom_call.1} parent=11 // pred_check
          %p368 = pneg %p258
        $region50: #{tpu_custom_call.1} parent=11 // pred_check_branch
          %370 = sbr.rel (%p368) target = $region52
        $region51: #{tpu_custom_call.1} parent=11 // pred_region
          _
        $region52: #{tpu_custom_call.1} parent=11 // pred_fallthru
          _
        // Predicated region
        $region53: #{tpu_custom_call.1} parent=11 // pred_check
          %p371 = pneg %p279
        $region54: #{tpu_custom_call.1} parent=11 // pred_check_branch
          %373 = sbr.rel (%p371) target = $region56
        $region55: #{tpu_custom_call.1} parent=11 // pred_region
          _
        $region56: #{tpu_custom_call.1} parent=11 // pred_fallthru
          _
        // Predicated region
        $region57: #{tpu_custom_call.1} parent=11 // pred_check
          %p374 = pneg %p300
        $region58: #{tpu_custom_call.1} parent=11 // pred_check_branch
          %376 = sbr.rel (%p374) target = $region60
        $region59: #{tpu_custom_call.1} parent=11 // pred_region
          _
        $region60: #{tpu_custom_call.1} parent=11 // pred_fallthru
          _
      $region12: #{tpu_custom_call.1} parent=5 // pred_fallthru
        _
      %p377 = scmp.lt.s32.totalorder %s22, 2
      // Predicated region
      $region61: #{tpu_custom_call.1} parent=5 // pred_check
        %p378 = pneg %p377
      $region62: #{tpu_custom_call.1} parent=5 // pred_check_branch
        %380 = sbr.rel (%p378) target = $region64
      $region63: #{tpu_custom_call.1} parent=5 // pred_region
        // Predicated region
        $region65: #{tpu_custom_call.1} parent=63 // pred_check
          %p381 = pneg %p42
        $region66: #{tpu_custom_call.1} parent=63 // pred_check_branch
          %383 = sbr.rel (%p381) target = $region68
        $region67: #{tpu_custom_call.1} parent=63 // pred_region
          %p384 = scmp.lt.s32.totalorder %s22, 1
          %s385 = scalar_select %p384, %s22, 1
          %s386 = smul.addr %s385, 8
          %s387 = scalar_lea.vmem %s0, %s386
        $region68: #{tpu_custom_call.1} parent=63 // pred_fallthru
          _
      $region64: #{tpu_custom_call.1} parent=5 // pred_fallthru
        _
      %p388 = scmp.le.s32.totalorder 1, %s22
      %p389 = scmp.lt.s32.totalorder %s22, 3
      %p390 = pnand %p388, %p389
      %p391 = pneg %p390
      // Predicated region
      $region69: #{tpu_custom_call.1} parent=5 // pred_check
        _
      $region70: #{tpu_custom_call.1} parent=5 // pred_check_branch
        %393 = sbr.rel (%p390) target = $region72
      $region71: #{tpu_custom_call.1} parent=5 // pred_region
        %s394 = ssub.s32 %s22, 1
        %p395 = scmp.lt.s32.totalorder %s27, 1
        %s396 = scalar_select %p395, %s27, 1
        %s397 = smul.addr %s396, 8
        %s398 = scalar_lea.vmem %s0, %s397
        %p399 = pneg %p48
        %p400 = pneg %p45
        %p401 = pneg %p69
        %p402 = pneg %p66
        %p403 = pneg %p90
        %p404 = pneg %p87
        %p405 = pneg %p111
        %p406 = pneg %p108
        %p407 = pneg %p132
        %p408 = pneg %p129
        %p409 = pneg %p153
        %p410 = pneg %p150
        %p411 = pneg %p174
        %p412 = pneg %p171
        %p413 = pneg %p195
        %p414 = pneg %p192
        %p415 = pneg %p216
        %p416 = pneg %p213
        %p417 = pneg %p237
        %p418 = pneg %p234
        %p419 = pneg %p258
        %p420 = pneg %p255
        %p421 = pneg %p279
        %p422 = pneg %p276
        %p423 = pneg %p300
        %p424 = pneg %p297
        %p425 = pneg %p326
        %p426 = pneg %p323
        %s427 = sand.u32 %s313, 1
        %s428 = scalar_lea.sflag [#allocation3], %s427
        %s429 = sand.u32 %s313, 1
        %s430 = smul.addr %s429, 8
        %s431 = scalar_lea.vmem [#allocation2], %s430
        %p432 = scmp.lt.s32.totalorder %s27, 1
        %s433 = scalar_select %p432, %s27, 1
        %s434 = smul.addr %s433, 8
        %s435 = scalar_lea.vmem %s0, %s434
        %v437 = vld [vmem:[%s435] sm:$0xff]
        %v438 = vld [vmem:[%s2] sm:$0x1]
        %v439 = vld [vmem:[%s4] sm:$0x1]
        %v440 = vld [vmem:[%s5] sm:$0x1]
        %v441 = vld [vmem:[%s6] sm:$0x1]
        %v442 = vld [vmem:[%s7] sm:$0x1]
        %v443 = vld [vmem:[%s8] sm:$0x1]
        %v444 = vld [vmem:[%s10] sm:$0x1]
        %v445 = vld [vmem:[%s12] sm:$0x1]
        %vm446 = vcmask 261120
        %v447 = vsel %vm446, %v437, 0.0
        %448 = vadd.xlane.f32.xlu0 %v447
        %v449 = vpop.xlane.xlu0 %448
        %v450 = vrcp.pop 32.0
        %v451 = vmul.f32 %v449, %v450
        %v452 = vsub.f32 %v437, %v451
        %v453 = vmul.f32 %v452, %v452
        %v454 = vsel %vm446, %v453, 0.0
        %455 = vadd.xlane.f32.xlu0 %v454
        %v456 = vpop.xlane.xlu0 %455
        %v457 = vmul.f32 %v456, %v450
        %v458 = vadd.f32 %v457, 1e-05
        %v459 = vrsqrt.pop %v458
        %v460 = vmul.f32 %v452, %v459
        %v462 = vlaneseq
        %v463 = vshrl.u32 %v462, 7
        %v464 = vsub.s32 0, %v463
        %v465 = vrot.slane %v440, %v464
        %v467 = vmul.f32 %v460, %v465
        %v469 = vlaneseq
        %v470 = vshrl.u32 %v469, 7
        %v471 = vsub.s32 0, %v470
        %v472 = vrot.slane %v441, %v471
        %v474 = vadd.f32 %v467, %v472
        %v475 = vpack.c.bf16 %v474, %v474
        %v476 = vld [vmem:[%s1] sm:$0xf]
        %v477 = vld [vmem:[%s1 + $0x4] sm:$0xf]
        %v478 = vld [vmem:[%s1 + $0x8] sm:$0xf]
        %v479 = vld [vmem:[%s1 + $0xc] sm:$0xf]
        %v481 = vlaneseq
        %v482 = vshrl.u32 %v481, 7
        %v483 = vsub.s32 0, %v482
        %v484 = vrot.slane %v438, %v483
        %v490 = vunpack.c.l.b16 %v476
        %v491 = vunpack.c.l.b16 %v477
        %v492 = vunpack.c.l.b16 %v478
        %v493 = vunpack.c.l.b16 %v479
        %v494 = vpack.c.b16 %v491, %v490
        %v495 = vpack.c.b16 %v493, %v492
        %v499 = vsel %vm446, %v475, 0
        %501 = vmatprep.subr.bf16.mxu0 0
        %502 = vmatpush1.bf16.msra.mxu0 0
        %503 = vmatprep.subr.bf16.mxu0 0
        %504 = vmatpush1.bf16.msra.mxu0 0
        %505 = vmatprep.subr.bf16.mxu0 0
        %506 = vmatpush1.bf16.msra.mxu0 0
        %507 = vmatprep.subr.bf16.mxu0 0
        %508 = vmatpush1.bf16.msra.mxu0 0
        %509 = vmatprep.subr.bf16.mxu0 0
        %510 = vmatpush1.bf16.msra.mxu0 0
        %511 = vmatprep.subr.bf16.mxu0 0
        %512 = vmatpush1.bf16.msra.mxu0 0
        %513 = vmatprep.subr.bf16.mxu0 0
        %514 = vmatpush1.bf16.msra.mxu0 %v495
        %515 = vmatprep.subr.bf16.mxu0 0
        %516 = vmatpush1.bf16.msra.mxu0 %v494
        %517 = vmatprep.subr.bf16.mxu0 0
        %518 = vmatpush2.bf16.msra.mxu0 0
        %519 = vmatprep.subr.bf16.mxu0 0
        %520 = vmatpush2.bf16.msra.mxu0 0
        %521 = vmatprep.subr.bf16.mxu0 0
        %522 = vmatpush2.bf16.msra.mxu0 0
        %523 = vmatprep.subr.bf16.mxu0 0
        %524 = vmatpush2.bf16.msra.mxu0 0
        %525 = vmatprep.subr.bf16.mxu0 0
        %526 = vmatpush2.bf16.msra.mxu0 0
        %527 = vmatprep.subr.bf16.mxu0 0
        %528 = vmatpush2.bf16.msra.mxu0 0
        %529 = vmatprep.subr.bf16.mxu0 0
        %530 = vmatpush2.bf16.msra.mxu0 0
        %531 = vmatprep.subr.bf16.mxu0 0
        %532 = vmatpush2.bf16.msra.mxu0 0
        %533 = vmatprep.mubr.bf16.mxu0 0
        %534 = vmatmul.mubr.bf16.gmra.mxu0 %v499
        %v535 = vpop.f32.mrf.mxu0
        %v536 = vadd.f32 %v484, %v535
        %v537 = vpop.f32.mrf.mxu0
        %v538 = vpop.f32.mrf.mxu0
        %v539 = vpop.f32.mrf.mxu0
        %540 = vdwg.mxu0
        %v541 = vmul.f32 %v536, 0.35355338
        %543 = vrot.lane.b32.xlu0 %v541, 120
        %v544 = vpop.permute.xlu0 %543
        %546 = vrot.lane.b32.xlu0 %v541, 112
        %v547 = vpop.permute.xlu0 %546
        %549 = vrot.lane.b32.xlu0 %v541, 104
        %v550 = vpop.permute.xlu0 %549
        %v552 = vcombine.low %v541, %v547
        %v553 = vcombine.high %v541, %v547
        %v555 = vunpack.c.l.s4 1983009808
        %v556 = vunpack.c.0.s8 %v555
        %v557 = vlaneseq
        %v558 = vshrl.u32 %v557, 7
        %v559 = vsub.s32 %v556, %v558
        %v560 = vrot.slane %v552, %v559
        %v562 = vunpack.c.l.s4 1983009808
        %v563 = vunpack.c.0.s8 %v562
        %v564 = vlaneseq
        %v565 = vshrl.u32 %v564, 7
        %v566 = vsub.s32 %v563, %v565
        %v567 = vrot.slane %v553, %v566
        %v568 = vcombine.low %v544, %v550
        %v569 = vcombine.high %v544, %v550
        %v571 = vunpack.c.l.s4 1983009808
        %v572 = vunpack.c.0.s8 %v571
        %v573 = vlaneseq
        %v574 = vshrl.u32 %v573, 7
        %v575 = vsub.s32 %v572, %v574
        %v576 = vrot.slane %v568, %v575
        %v578 = vunpack.c.l.s4 1983009808
        %v579 = vunpack.c.0.s8 %v578
        %v580 = vlaneseq
        %v581 = vshrl.u32 %v580, 7
        %v582 = vsub.s32 %v579, %v581
        %v583 = vrot.slane %v569, %v582
        %v584 = vcombine.low %v560, %v576
        %v585 = vcombine.high %v560, %v576
        %v587 = vunpack.c.l.s4 1934713408
        %v588 = vunpack.c.0.s8 %v587
        %v589 = vlaneseq
        %v590 = vshrl.u32 %v589, 7
        %v591 = vsub.s32 %v588, %v590
        %v592 = vrot.slane %v584, %v591
        %v594 = vunpack.c.l.s4 1934713408
        %v595 = vunpack.c.0.s8 %v594
        %v596 = vlaneseq
        %v597 = vshrl.u32 %v596, 7
        %v598 = vsub.s32 %v595, %v597
        %v599 = vrot.slane %v585, %v598
        %v600 = vcombine.low %v567, %v583
        %v601 = vcombine.high %v567, %v583
        %v603 = vunpack.c.l.s4 1934713408
        %v604 = vunpack.c.0.s8 %v603
        %v605 = vlaneseq
        %v606 = vshrl.u32 %v605, 7
        %v607 = vsub.s32 %v604, %v606
        %v608 = vrot.slane %v600, %v607
        %v610 = vunpack.c.l.s4 1934713408
        %v611 = vunpack.c.0.s8 %v610
        %v612 = vlaneseq
        %v613 = vshrl.u32 %v612, 7
        %v614 = vsub.s32 %v611, %v613
        %v615 = vrot.slane %v601, %v614
        %v616 = vcombine.high %v592, 0.0
        %v617 = vcombine.high %v599, 0.0
        %v618 = vcombine.high %v608, 0.0
        %v619 = vcombine.high %v615, 0.0
        %v620 = vcombine.low %v592, %v599
        %v622 = vunpack.c.l.s4 1983009808
        %v623 = vunpack.c.0.s8 %v622
        %v624 = vlaneseq
        %v625 = vshrl.u32 %v624, 7
        %v626 = vsub.s32 %v623, %v625
        %v627 = vrot.slane %v620, %v626
        %v628 = vcombine.low %v616, %v617
        %v630 = vunpack.c.l.s4 1983009808
        %v631 = vunpack.c.0.s8 %v630
        %v632 = vlaneseq
        %v633 = vshrl.u32 %v632, 7
        %v634 = vsub.s32 %v631, %v633
        %v635 = vrot.slane %v628, %v634
        %v636 = vcombine.low %v608, %v615
        %v638 = vunpack.c.l.s4 1983009808
        %v639 = vunpack.c.0.s8 %v638
        %v640 = vlaneseq
        %v641 = vshrl.u32 %v640, 7
        %v642 = vsub.s32 %v639, %v641
        %v643 = vrot.slane %v636, %v642
        %v644 = vcombine.low %v618, %v619
        %v646 = vunpack.c.l.s4 1983009808
        %v647 = vunpack.c.0.s8 %v646
        %v648 = vlaneseq
        %v649 = vshrl.u32 %v648, 7
        %v650 = vsub.s32 %v647, %v649
        %v651 = vrot.slane %v644, %v650
        %v652 = vcombine.low %v627, %v635
        %v653 = vcombine.high %v627, %v635
        %v655 = vunpack.c.l.s4 1934713408
        %v656 = vunpack.c.0.s8 %v655
        %v657 = vlaneseq
        %v658 = vshrl.u32 %v657, 7
        %v659 = vsub.s32 %v656, %v658
        %v660 = vrot.slane %v652, %v659
        %v662 = vunpack.c.l.s4 1934713408
        %v663 = vunpack.c.0.s8 %v662
        %v664 = vlaneseq
        %v665 = vshrl.u32 %v664, 7
        %v666 = vsub.s32 %v663, %v665
        %v667 = vrot.slane %v653, %v666
        %v668 = vcombine.low %v643, %v651
        %v669 = vcombine.high %v643, %v651
        %v671 = vunpack.c.l.s4 1934713408
        %v672 = vunpack.c.0.s8 %v671
        %v673 = vlaneseq
        %v674 = vshrl.u32 %v673, 7
        %v675 = vsub.s32 %v672, %v674
        %v676 = vrot.slane %v668, %v675
        %v678 = vunpack.c.l.s4 1934713408
        %v679 = vunpack.c.0.s8 %v678
        %v680 = vlaneseq
        %v681 = vshrl.u32 %v680, 7
        %v682 = vsub.s32 %v679, %v681
        %v683 = vrot.slane %v669, %v682
        %v684 = vcombine.low %v660, %v676
        %v685 = vcombine.high %v660, %v676
        %v686 = vcombine.low %v667, %v683
        %v687 = vcombine.high %v667, %v683
        %v688 = vpack.c.bf16 %v684, %v684
        %v689 = vpack.c.bf16 %v685, %v685
        %v690 = vpack.c.bf16 %v686, %v686
        %v691 = vpack.c.bf16 %v687, %v687
        %693 = vrot.lane.b32.xlu0 %v536, 120
        %v694 = vpop.permute.xlu0 %693
        %695 = vrot.lane.b32.xlu0 %v536, 112
        %v696 = vpop.permute.xlu0 %695
        %697 = vrot.lane.b32.xlu0 %v536, 104
        %v698 = vpop.permute.xlu0 %697
        %699 = vrot.lane.b32.xlu0 %v536, 96
        %v700 = vpop.permute.xlu0 %699
        %701 = vrot.lane.b32.xlu0 %v694, 96
        %v702 = vpop.permute.xlu0 %701
        %703 = vrot.lane.b32.xlu0 %v696, 96
        %v704 = vpop.permute.xlu0 %703
        %705 = vrot.lane.b32.xlu0 %v698, 96
        %v706 = vpop.permute.xlu0 %705
        %v711 = vcombine.low %v700, %v704
        %v712 = vcombine.high %v700, %v704
        %v714 = vunpack.c.l.s4 1983009808
        %v715 = vunpack.c.0.s8 %v714
        %v716 = vlaneseq
        %v717 = vshrl.u32 %v716, 7
        %v718 = vsub.s32 %v715, %v717
        %v719 = vrot.slane %v711, %v718
        %v721 = vunpack.c.l.s4 1983009808
        %v722 = vunpack.c.0.s8 %v721
        %v723 = vlaneseq
        %v724 = vshrl.u32 %v723, 7
        %v725 = vsub.s32 %v722, %v724
        %v726 = vrot.slane %v712, %v725
        %v727 = vcombine.low %v702, %v706
        %v728 = vcombine.high %v702, %v706
        %v730 = vunpack.c.l.s4 1983009808
        %v731 = vunpack.c.0.s8 %v730
        %v732 = vlaneseq
        %v733 = vshrl.u32 %v732, 7
        %v734 = vsub.s32 %v731, %v733
        %v735 = vrot.slane %v727, %v734
        %v737 = vunpack.c.l.s4 1983009808
        %v738 = vunpack.c.0.s8 %v737
        %v739 = vlaneseq
        %v740 = vshrl.u32 %v739, 7
        %v741 = vsub.s32 %v738, %v740
        %v742 = vrot.slane %v728, %v741
        %v743 = vcombine.low %v719, %v735
        %v744 = vcombine.high %v719, %v735
        %v746 = vunpack.c.l.s4 1934713408
        %v747 = vunpack.c.0.s8 %v746
        %v748 = vlaneseq
        %v749 = vshrl.u32 %v748, 7
        %v750 = vsub.s32 %v747, %v749
        %v751 = vrot.slane %v743, %v750
        %v753 = vunpack.c.l.s4 1934713408
        %v754 = vunpack.c.0.s8 %v753
        %v755 = vlaneseq
        %v756 = vshrl.u32 %v755, 7
        %v757 = vsub.s32 %v754, %v756
        %v758 = vrot.slane %v744, %v757
        %v759 = vcombine.low %v726, %v742
        %v760 = vcombine.high %v726, %v742
        %v762 = vunpack.c.l.s4 1934713408
        %v763 = vunpack.c.0.s8 %v762
        %v764 = vlaneseq
        %v765 = vshrl.u32 %v764, 7
        %v766 = vsub.s32 %v763, %v765
        %v767 = vrot.slane %v759, %v766
        %v769 = vunpack.c.l.s4 1934713408
        %v770 = vunpack.c.0.s8 %v769
        %v771 = vlaneseq
        %v772 = vshrl.u32 %v771, 7
        %v773 = vsub.s32 %v770, %v772
        %v774 = vrot.slane %v760, %v773
        %v775 = vcombine.high %v751, 0.0
        %v776 = vcombine.high %v758, 0.0
        %v777 = vcombine.high %v767, 0.0
        %v778 = vcombine.high %v774, 0.0
        %v779 = vcombine.low %v751, %v758
        %v781 = vunpack.c.l.s4 1983009808
        %v782 = vunpack.c.0.s8 %v781
        %v783 = vlaneseq
        %v784 = vshrl.u32 %v783, 7
        %v785 = vsub.s32 %v782, %v784
        %v786 = vrot.slane %v779, %v785
        %v787 = vcombine.low %v775, %v776
        %v789 = vunpack.c.l.s4 1983009808
        %v790 = vunpack.c.0.s8 %v789
        %v791 = vlaneseq
        %v792 = vshrl.u32 %v791, 7
        %v793 = vsub.s32 %v790, %v792
        %v794 = vrot.slane %v787, %v793
        %v795 = vcombine.low %v767, %v774
        %v797 = vunpack.c.l.s4 1983009808
        %v798 = vunpack.c.0.s8 %v797
        %v799 = vlaneseq
        %v800 = vshrl.u32 %v799, 7
        %v801 = vsub.s32 %v798, %v800
        %v802 = vrot.slane %v795, %v801
        %v803 = vcombine.low %v777, %v778
        %v805 = vunpack.c.l.s4 1983009808
        %v806 = vunpack.c.0.s8 %v805
        %v807 = vlaneseq
        %v808 = vshrl.u32 %v807, 7
        %v809 = vsub.s32 %v806, %v808
        %v810 = vrot.slane %v803, %v809
        %v811 = vcombine.low %v786, %v794
        %v812 = vcombine.high %v786, %v794
        %v814 = vunpack.c.l.s4 1934713408
        %v815 = vunpack.c.0.s8 %v814
        %v816 = vlaneseq
        %v817 = vshrl.u32 %v816, 7
        %v818 = vsub.s32 %v815, %v817
        %v819 = vrot.slane %v811, %v818
        %v821 = vunpack.c.l.s4 1934713408
        %v822 = vunpack.c.0.s8 %v821
        %v823 = vlaneseq
        %v824 = vshrl.u32 %v823, 7
        %v825 = vsub.s32 %v822, %v824
        %v826 = vrot.slane %v812, %v825
        %v827 = vcombine.low %v802, %v810
        %v828 = vcombine.high %v802, %v810
        %v830 = vunpack.c.l.s4 1934713408
        %v831 = vunpack.c.0.s8 %v830
        %v832 = vlaneseq
        %v833 = vshrl.u32 %v832, 7
        %v834 = vsub.s32 %v831, %v833
        %v835 = vrot.slane %v827, %v834
        %v837 = vunpack.c.l.s4 1934713408
        %v838 = vunpack.c.0.s8 %v837
        %v839 = vlaneseq
        %v840 = vshrl.u32 %v839, 7
        %v841 = vsub.s32 %v838, %v840
        %v842 = vrot.slane %v828, %v841
        %v843 = vcombine.low %v819, %v835
        %v844 = vcombine.high %v819, %v835
        %v845 = vcombine.low %v826, %v842
        %v846 = vcombine.high %v826, %v842
        %v847 = vpack.c.bf16 %v843, %v843
        %v848 = vpack.c.bf16 %v844, %v844
        %v849 = vpack.c.bf16 %v845, %v845
        %v850 = vpack.c.bf16 %v846, %v846
        %851 = vrot.lane.b32.xlu0 %v536, 64
        %v852 = vpop.permute.xlu0 %851
        %853 = vrot.lane.b32.xlu0 %v694, 64
        %v854 = vpop.permute.xlu0 %853
        %855 = vrot.lane.b32.xlu0 %v696, 64
        %v856 = vpop.permute.xlu0 %855
        %857 = vrot.lane.b32.xlu0 %v698, 64
        %v858 = vpop.permute.xlu0 %857
        %v863 = vcombine.low %v852, %v856
        %v864 = vcombine.high %v852, %v856
        %v866 = vunpack.c.l.s4 1983009808
        %v867 = vunpack.c.0.s8 %v866
        %v868 = vlaneseq
        %v869 = vshrl.u32 %v868, 7
        %v870 = vsub.s32 %v867, %v869
        %v871 = vrot.slane %v863, %v870
        %v873 = vunpack.c.l.s4 1983009808
        %v874 = vunpack.c.0.s8 %v873
        %v875 = vlaneseq
        %v876 = vshrl.u32 %v875, 7
        %v877 = vsub.s32 %v874, %v876
        %v878 = vrot.slane %v864, %v877
        %v879 = vcombine.low %v854, %v858
        %v880 = vcombine.high %v854, %v858
        %v882 = vunpack.c.l.s4 1983009808
        %v883 = vunpack.c.0.s8 %v882
        %v884 = vlaneseq
        %v885 = vshrl.u32 %v884, 7
        %v886 = vsub.s32 %v883, %v885
        %v887 = vrot.slane %v879, %v886
        %v889 = vunpack.c.l.s4 1983009808
        %v890 = vunpack.c.0.s8 %v889
        %v891 = vlaneseq
        %v892 = vshrl.u32 %v891, 7
        %v893 = vsub.s32 %v890, %v892
        %v894 = vrot.slane %v880, %v893
        %v895 = vcombine.low %v871, %v887
        %v896 = vcombine.high %v871, %v887
        %v898 = vunpack.c.l.s4 1934713408
        %v899 = vunpack.c.0.s8 %v898
        %v900 = vlaneseq
        %v901 = vshrl.u32 %v900, 7
        %v902 = vsub.s32 %v899, %v901
        %v903 = vrot.slane %v895, %v902
        %v905 = vunpack.c.l.s4 1934713408
        %v906 = vunpack.c.0.s8 %v905
        %v907 = vlaneseq
        %v908 = vshrl.u32 %v907, 7
        %v909 = vsub.s32 %v906, %v908
        %v910 = vrot.slane %v896, %v909
        %v911 = vcombine.low %v878, %v894
        %v912 = vcombine.high %v878, %v894
        %v914 = vunpack.c.l.s4 1934713408
        %v915 = vunpack.c.0.s8 %v914
        %v916 = vlaneseq
        %v917 = vshrl.u32 %v916, 7
        %v918 = vsub.s32 %v915, %v917
        %v919 = vrot.slane %v911, %v918
        %v921 = vunpack.c.l.s4 1934713408
        %v922 = vunpack.c.0.s8 %v921
        %v923 = vlaneseq
        %v924 = vshrl.u32 %v923, 7
        %v925 = vsub.s32 %v922, %v924
        %v926 = vrot.slane %v912, %v925
        %v927 = vcombine.high %v903, 0.0
        %v928 = vcombine.high %v910, 0.0
        %v929 = vcombine.high %v919, 0.0
        %v930 = vcombine.high %v926, 0.0
        %v931 = vcombine.low %v903, %v910
        %v933 = vunpack.c.l.s4 1983009808
        %v934 = vunpack.c.0.s8 %v933
        %v935 = vlaneseq
        %v936 = vshrl.u32 %v935, 7
        %v937 = vsub.s32 %v934, %v936
        %v938 = vrot.slane %v931, %v937
        %v939 = vcombine.low %v927, %v928
        %v941 = vunpack.c.l.s4 1983009808
        %v942 = vunpack.c.0.s8 %v941
        %v943 = vlaneseq
        %v944 = vshrl.u32 %v943, 7
        %v945 = vsub.s32 %v942, %v944
        %v946 = vrot.slane %v939, %v945
        %v947 = vcombine.low %v919, %v926
        %v949 = vunpack.c.l.s4 1983009808
        %v950 = vunpack.c.0.s8 %v949
        %v951 = vlaneseq
        %v952 = vshrl.u32 %v951, 7
        %v953 = vsub.s32 %v950, %v952
        %v954 = vrot.slane %v947, %v953
        %v955 = vcombine.low %v929, %v930
        %v957 = vunpack.c.l.s4 1983009808
        %v958 = vunpack.c.0.s8 %v957
        %v959 = vlaneseq
        %v960 = vshrl.u32 %v959, 7
        %v961 = vsub.s32 %v958, %v960
        %v962 = vrot.slane %v955, %v961
        %v963 = vcombine.low %v938, %v946
        %v964 = vcombine.high %v938, %v946
        %v966 = vunpack.c.l.s4 1934713408
        %v967 = vunpack.c.0.s8 %v966
        %v968 = vlaneseq
        %v969 = vshrl.u32 %v968, 7
        %v970 = vsub.s32 %v967, %v969
        %v971 = vrot.slane %v963, %v970
        %v973 = vunpack.c.l.s4 1934713408
        %v974 = vunpack.c.0.s8 %v973
        %v975 = vlaneseq
        %v976 = vshrl.u32 %v975, 7
        %v977 = vsub.s32 %v974, %v976
        %v978 = vrot.slane %v964, %v977
        %v979 = vcombine.low %v954, %v962
        %v980 = vcombine.high %v954, %v962
        %v982 = vunpack.c.l.s4 1934713408
        %v983 = vunpack.c.0.s8 %v982
        %v984 = vlaneseq
        %v985 = vshrl.u32 %v984, 7
        %v986 = vsub.s32 %v983, %v985
        %v987 = vrot.slane %v979, %v986
        %v989 = vunpack.c.l.s4 1934713408
        %v990 = vunpack.c.0.s8 %v989
        %v991 = vlaneseq
        %v992 = vshrl.u32 %v991, 7
        %v993 = vsub.s32 %v990, %v992
        %v994 = vrot.slane %v980, %v993
        %v995 = vcombine.low %v971, %v987
        %v996 = vcombine.high %v971, %v987
        %v997 = vcombine.low %v978, %v994
        %v998 = vcombine.high %v978, %v994
        %v999 = vpack.c.bf16 %v995, %v995
        %v1000 = vpack.c.bf16 %v996, %v996
        %v1001 = vpack.c.bf16 %v997, %v997
        %v1002 = vpack.c.bf16 %v998, %v998
        %vm1003 = vcmask 64512
        %v1005 = vsel %vm1003, %v688, 0
        %v1008 = vsel %vm1003, %v847, 0
        %1010 = vmatprep.subr.bf16.mxu0 0
        %1011 = vmatpush1.bf16.xpose.msra.mxu0 0
        %1012 = vmatprep.subr.bf16.mxu0 0
        %1013 = vmatpush1.bf16.xpose.msra.mxu0 0
        %1014 = vmatprep.subr.bf16.mxu0 0
        %1015 = vmatpush1.bf16.xpose.msra.mxu0 0
        %1016 = vmatprep.subr.bf16.mxu0 0
        %1017 = vmatpush1.bf16.xpose.msra.mxu0 0
        %1018 = vmatprep.subr.bf16.mxu0 0
        %1019 = vmatpush1.bf16.xpose.msra.mxu0 0
        %1020 = vmatprep.subr.bf16.mxu0 0
        %1021 = vmatpush1.bf16.xpose.msra.mxu0 0
        %1022 = vmatprep.subr.bf16.mxu0 0
        %1023 = vmatpush1.bf16.xpose.msra.mxu0 0
        %1024 = vmatprep.subr.bf16.mxu0 0
        %1025 = vmatpush1.bf16.xpose.msra.mxu0 %v1008
        %1026 = vmatprep.subr.bf16.mxu0 0
        %1027 = vmatpush2.bf16.xpose.msra.mxu0 0
        %1028 = vmatprep.subr.bf16.mxu0 0
        %1029 = vmatpush2.bf16.xpose.msra.mxu0 0
        %1030 = vmatprep.subr.bf16.mxu0 0
        %1031 = vmatpush2.bf16.xpose.msra.mxu0 0
        %1032 = vmatprep.subr.bf16.mxu0 0
        %1033 = vmatpush2.bf16.xpose.msra.mxu0 0
        %1034 = vmatprep.subr.bf16.mxu0 0
        %1035 = vmatpush2.bf16.xpose.msra.mxu0 0
        %1036 = vmatprep.subr.bf16.mxu0 0
        %1037 = vmatpush2.bf16.xpose.msra.mxu0 0
        %1038 = vmatprep.subr.bf16.mxu0 0
        %1039 = vmatpush2.bf16.xpose.msra.mxu0 0
        %1040 = vmatprep.subr.bf16.mxu0 0
        %1041 = vmatpush2.bf16.xpose.msra.mxu0 0
        %1042 = vmatprep.mubr.bf16.mxu0 0
        %1043 = vmatmul.mubr.bf16.gmra.mxu0 %v1005
        %v1044 = vpop.f32.mrf.mxu0
        %v1045 = vadd.f32 0.0, %v1044
        %v1046 = vpop.f32.mrf.mxu0
        %v1047 = vpop.f32.mrf.mxu0
        %v1048 = vpop.f32.mrf.mxu0
        %1049 = vdwg.mxu0
        %v1051 = vsel %vm1003, %v689, 0
        %v1054 = vsel %vm1003, %v848, 0
        %1056 = vmatprep.subr.bf16.mxu0 0
        %1057 = vmatpush1.bf16.xpose.msra.mxu0 0
        %1058 = vmatprep.subr.bf16.mxu0 0
        %1059 = vmatpush1.bf16.xpose.msra.mxu0 0
        %1060 = vmatprep.subr.bf16.mxu0 0
        %1061 = vmatpush1.bf16.xpose.msra.mxu0 0
        %1062 = vmatprep.subr.bf16.mxu0 0
        %1063 = vmatpush1.bf16.xpose.msra.mxu0 0
        %1064 = vmatprep.subr.bf16.mxu0 0
        %1065 = vmatpush1.bf16.xpose.msra.mxu0 0
        %1066 = vmatprep.subr.bf16.mxu0 0
        %1067 = vmatpush1.bf16.xpose.msra.mxu0 0
        %1068 = vmatprep.subr.bf16.mxu0 0
        %1069 = vmatpush1.bf16.xpose.msra.mxu0 0
        %1070 = vmatprep.subr.bf16.mxu0 0
        %1071 = vmatpush1.bf16.xpose.msra.mxu0 %v1054
        %1072 = vmatprep.subr.bf16.mxu0 0
        %1073 = vmatpush2.bf16.xpose.msra.mxu0 0
        %1074 = vmatprep.subr.bf16.mxu0 0
        %1075 = vmatpush2.bf16.xpose.msra.mxu0 0
        %1076 = vmatprep.subr.bf16.mxu0 0
        %1077 = vmatpush2.bf16.xpose.msra.mxu0 0
        %1078 = vmatprep.subr.bf16.mxu0 0
        %1079 = vmatpush2.bf16.xpose.msra.mxu0 0
        %1080 = vmatprep.subr.bf16.mxu0 0
        %1081 = vmatpush2.bf16.xpose.msra.mxu0 0
        %1082 = vmatprep.subr.bf16.mxu0 0
        %1083 = vmatpush2.bf16.xpose.msra.mxu0 0
        %1084 = vmatprep.subr.bf16.mxu0 0
        %1085 = vmatpush2.bf16.xpose.msra.mxu0 0
        %1086 = vmatprep.subr.bf16.mxu0 0
        %1087 = vmatpush2.bf16.xpose.msra.mxu0 0
        %1088 = vmatprep.mubr.bf16.mxu0 0
        %1089 = vmatmul.mubr.bf16.gmra.mxu0 %v1051
        %v1090 = vpop.f32.mrf.mxu0
        %v1091 = vadd.f32 0.0, %v1090
        %v1092 = vpop.f32.mrf.mxu0
        %v1093 = vpop.f32.mrf.mxu0
        %v1094 = vpop.f32.mrf.mxu0
        %1095 = vdwg.mxu0
        %v1097 = vsel %vm1003, %v690, 0
        %v1100 = vsel %vm1003, %v849, 0
        %1102 = vmatprep.subr.bf16.mxu0 0
        %1103 = vmatpush1.bf16.xpose.msra.mxu0 0
        %1104 = vmatprep.subr.bf16.mxu0 0
        %1105 = vmatpush1.bf16.xpose.msra.mxu0 0
        %1106 = vmatprep.subr.bf16.mxu0 0
        %1107 = vmatpush1.bf16.xpose.msra.mxu0 0
        %1108 = vmatprep.subr.bf16.mxu0 0
        %1109 = vmatpush1.bf16.xpose.msra.mxu0 0
        %1110 = vmatprep.subr.bf16.mxu0 0
        %1111 = vmatpush1.bf16.xpose.msra.mxu0 0
        %1112 = vmatprep.subr.bf16.mxu0 0
        %1113 = vmatpush1.bf16.xpose.msra.mxu0 0
        %1114 = vmatprep.subr.bf16.mxu0 0
        %1115 = vmatpush1.bf16.xpose.msra.mxu0 0
        %1116 = vmatprep.subr.bf16.mxu0 0
        %1117 = vmatpush1.bf16.xpose.msra.mxu0 %v1100
        %1118 = vmatprep.subr.bf16.mxu0 0
        %1119 = vmatpush2.bf16.xpose.msra.mxu0 0
        %1120 = vmatprep.subr.bf16.mxu0 0
        %1121 = vmatpush2.bf16.xpose.msra.mxu0 0
        %1122 = vmatprep.subr.bf16.mxu0 0
        %1123 = vmatpush2.bf16.xpose.msra.mxu0 0
        %1124 = vmatprep.subr.bf16.mxu0 0
        %1125 = vmatpush2.bf16.xpose.msra.mxu0 0
        %1126 = vmatprep.subr.bf16.mxu0 0
        %1127 = vmatpush2.bf16.xpose.msra.mxu0 0
        %1128 = vmatprep.subr.bf16.mxu0 0
        %1129 = vmatpush2.bf16.xpose.msra.mxu0 0
        %1130 = vmatprep.subr.bf16.mxu0 0
        %1131 = vmatpush2.bf16.xpose.msra.mxu0 0
        %1132 = vmatprep.subr.bf16.mxu0 0
        %1133 = vmatpush2.bf16.xpose.msra.mxu0 0
        %1134 = vmatprep.mubr.bf16.mxu0 0
        %1135 = vmatmul.mubr.bf16.gmra.mxu0 %v1097
        %v1136 = vpop.f32.mrf.mxu0
        %v1137 = vadd.f32 0.0, %v1136
        %v1138 = vpop.f32.mrf.mxu0
        %v1139 = vpop.f32.mrf.mxu0
        %v1140 = vpop.f32.mrf.mxu0
        %1141 = vdwg.mxu0
        %v1143 = vsel %vm1003, %v691, 0
        %v1146 = vsel %vm1003, %v850, 0
        %1148 = vmatprep.subr.bf16.mxu0 0
        %1149 = vmatpush1.bf16.xpose.msra.mxu0 0
        %1150 = vmatprep.subr.bf16.mxu0 0
        %1151 = vmatpush1.bf16.xpose.msra.mxu0 0
        %1152 = vmatprep.subr.bf16.mxu0 0
        %1153 = vmatpush1.bf16.xpose.msra.mxu0 0
        %1154 = vmatprep.subr.bf16.mxu0 0
        %1155 = vmatpush1.bf16.xpose.msra.mxu0 0
        %1156 = vmatprep.subr.bf16.mxu0 0
        %1157 = vmatpush1.bf16.xpose.msra.mxu0 0
        %1158 = vmatprep.subr.bf16.mxu0 0
        %1159 = vmatpush1.bf16.xpose.msra.mxu0 0
        %1160 = vmatprep.subr.bf16.mxu0 0
        %1161 = vmatpush1.bf16.xpose.msra.mxu0 0
        %1162 = vmatprep.subr.bf16.mxu0 0
        %1163 = vmatpush1.bf16.xpose.msra.mxu0 %v1146
        %1164 = vmatprep.subr.bf16.mxu0 0
        %1165 = vmatpush2.bf16.xpose.msra.mxu0 0
        %1166 = vmatprep.subr.bf16.mxu0 0
        %1167 = vmatpush2.bf16.xpose.msra.mxu0 0
        %1168 = vmatprep.subr.bf16.mxu0 0
        %1169 = vmatpush2.bf16.xpose.msra.mxu0 0
        %1170 = vmatprep.subr.bf16.mxu0 0
        %1171 = vmatpush2.bf16.xpose.msra.mxu0 0
        %1172 = vmatprep.subr.bf16.mxu0 0
        %1173 = vmatpush2.bf16.xpose.msra.mxu0 0
        %1174 = vmatprep.subr.bf16.mxu0 0
        %1175 = vmatpush2.bf16.xpose.msra.mxu0 0
        %1176 = vmatprep.subr.bf16.mxu0 0
        %1177 = vmatpush2.bf16.xpose.msra.mxu0 0
        %1178 = vmatprep.subr.bf16.mxu0 0
        %1179 = vmatpush2.bf16.xpose.msra.mxu0 0
        %1180 = vmatprep.mubr.bf16.mxu0 0
        %1181 = vmatmul.mubr.bf16.gmra.mxu0 %v1143
        %v1182 = vpop.f32.mrf.mxu0
        %v1183 = vadd.f32 0.0, %v1182
        %v1184 = vpop.f32.mrf.mxu0
        %v1185 = vpop.f32.mrf.mxu0
        %v1186 = vpop.f32.mrf.mxu0
        %1187 = vdwg.mxu0
        %v1188 = vsel %vm1003, %v1045, -inf
        %1189 = vmax.xlane.f32.xlu0 %v1188
        %v1190 = vpop.xlane.xlu0 %1189
        %v1191 = vsel %vm1003, %v1091, -inf
        %1192 = vmax.xlane.f32.xlu0 %v1191
        %v1193 = vpop.xlane.xlu0 %1192
        %v1194 = vsel %vm1003, %v1137, -inf
        %1195 = vmax.xlane.f32.xlu0 %v1194
        %v1196 = vpop.xlane.xlu0 %1195
        %v1197 = vsel %vm1003, %v1183, -inf
        %1198 = vmax.xlane.f32.xlu0 %v1197
        %v1199 = vpop.xlane.xlu0 %1198
        %v1200 = vsub.f32 %v1045, %v1190
        %v1201 = vsub.f32 %v1091, %v1193
        %v1202 = vsub.f32 %v1137, %v1196
        %v1203 = vsub.f32 %v1183, %v1199
        %v1204 = vmul.f32 %v1200, 1.442695
        %v1205 = vpow.pop %v1204
        %v1206 = vmul.f32 %v1201, 1.442695
        %v1207 = vpow.pop %v1206
        %v1208 = vmul.f32 %v1202, 1.442695
        %v1209 = vpow.pop %v1208
        %v1210 = vmul.f32 %v1203, 1.442695
        %v1211 = vpow.pop %v1210
        %v1212 = vsel %vm1003, %v1205, 0.0
        %1213 = vadd.xlane.f32.xlu0 %v1212
        %v1214 = vpop.xlane.xlu0 %1213
        %v1215 = vsel %vm1003, %v1207, 0.0
        %1216 = vadd.xlane.f32.xlu0 %v1215
        %v1217 = vpop.xlane.xlu0 %1216
        %v1218 = vsel %vm1003, %v1209, 0.0
        %1219 = vadd.xlane.f32.xlu0 %v1218
        %v1220 = vpop.xlane.xlu0 %1219
        %v1221 = vsel %vm1003, %v1211, 0.0
        %1222 = vadd.xlane.f32.xlu0 %v1221
        %v1223 = vpop.xlane.xlu0 %1222
        %v1224 = vrcp.pop %v1214
        %v1225 = vrcp.pop %v1217
        %v1226 = vrcp.pop %v1220
        %v1227 = vrcp.pop %v1223
        %v1228 = vmul.f32 %v1205, %v1224
        %v1229 = vmul.f32 %v1207, %v1225
        %v1230 = vmul.f32 %v1209, %v1226
        %v1231 = vmul.f32 %v1211, %v1227
        %v1232 = vpack.c.bf16 %v1228, %v1228
        %v1233 = vpack.c.bf16 %v1229, %v1229
        %v1234 = vpack.c.bf16 %v1230, %v1230
        %v1235 = vpack.c.bf16 %v1231, %v1231
        %v1237 = vsel %vm1003, %v1232, 0
        %vm1239 = vcmask 1043456
        %v1241 = vsel %vm1239, %v999, 0
        %1243 = vmatprep.subr.bf16.mxu0 0
        %1244 = vmatpush1.bf16.msra.mxu0 0
        %1245 = vmatprep.subr.bf16.mxu0 0
        %1246 = vmatpush1.bf16.msra.mxu0 0
        %1247 = vmatprep.subr.bf16.mxu0 0
        %1248 = vmatpush1.bf16.msra.mxu0 0
        %1249 = vmatprep.subr.bf16.mxu0 0
        %1250 = vmatpush1.bf16.msra.mxu0 0
        %1251 = vmatprep.subr.bf16.mxu0 0
        %1252 = vmatpush1.bf16.msra.mxu0 0
        %1253 = vmatprep.subr.bf16.mxu0 0
        %1254 = vmatpush1.bf16.msra.mxu0 0
        %1255 = vmatprep.subr.bf16.mxu0 0
        %1256 = vmatpush1.bf16.msra.mxu0 0
        %1257 = vmatprep.subr.bf16.mxu0 0
        %1258 = vmatpush1.bf16.msra.mxu0 %v1241
        %1259 = vmatprep.subr.bf16.mxu0 0
        %1260 = vmatpush2.bf16.msra.mxu0 0
        %1261 = vmatprep.subr.bf16.mxu0 0
        %1262 = vmatpush2.bf16.msra.mxu0 0
        %1263 = vmatprep.subr.bf16.mxu0 0
        %1264 = vmatpush2.bf16.msra.mxu0 0
        %1265 = vmatprep.subr.bf16.mxu0 0
        %1266 = vmatpush2.bf16.msra.mxu0 0
        %1267 = vmatprep.subr.bf16.mxu0 0
        %1268 = vmatpush2.bf16.msra.mxu0 0
        %1269 = vmatprep.subr.bf16.mxu0 0
        %1270 = vmatpush2.bf16.msra.mxu0 0
        %1271 = vmatprep.subr.bf16.mxu0 0
        %1272 = vmatpush2.bf16.msra.mxu0 0
        %1273 = vmatprep.subr.bf16.mxu0 0
        %1274 = vmatpush2.bf16.msra.mxu0 0
        %1275 = vmatprep.mubr.bf16.mxu0 0
        %1276 = vmatmul.mubr.bf16.gmra.mxu0 %v1237
        %v1277 = vpop.f32.mrf.mxu0
        %v1278 = vadd.f32 0.0, %v1277
        %v1279 = vpop.f32.mrf.mxu0
        %v1280 = vpop.f32.mrf.mxu0
        %v1281 = vpop.f32.mrf.mxu0
        %1282 = vdwg.mxu0
        %v1284 = vsel %vm1003, %v1233, 0
        %v1287 = vsel %vm1239, %v1000, 0
        %1289 = vmatprep.subr.bf16.mxu0 0
        %1290 = vmatpush1.bf16.msra.mxu0 0
        %1291 = vmatprep.subr.bf16.mxu0 0
        %1292 = vmatpush1.bf16.msra.mxu0 0
        %1293 = vmatprep.subr.bf16.mxu0 0
        %1294 = vmatpush1.bf16.msra.mxu0 0
        %1295 = vmatprep.subr.bf16.mxu0 0
        %1296 = vmatpush1.bf16.msra.mxu0 0
        %1297 = vmatprep.subr.bf16.mxu0 0
        %1298 = vmatpush1.bf16.msra.mxu0 0
        %1299 = vmatprep.subr.bf16.mxu0 0
        %1300 = vmatpush1.bf16.msra.mxu0 0
        %1301 = vmatprep.subr.bf16.mxu0 0
        %1302 = vmatpush1.bf16.msra.mxu0 0
        %1303 = vmatprep.subr.bf16.mxu0 0
        %1304 = vmatpush1.bf16.msra.mxu0 %v1287
        %1305 = vmatprep.subr.bf16.mxu0 0
        %1306 = vmatpush2.bf16.msra.mxu0 0
        %1307 = vmatprep.subr.bf16.mxu0 0
        %1308 = vmatpush2.bf16.msra.mxu0 0
        %1309 = vmatprep.subr.bf16.mxu0 0
        %1310 = vmatpush2.bf16.msra.mxu0 0
        %1311 = vmatprep.subr.bf16.mxu0 0
        %1312 = vmatpush2.bf16.msra.mxu0 0
        %1313 = vmatprep.subr.bf16.mxu0 0
        %1314 = vmatpush2.bf16.msra.mxu0 0
        %1315 = vmatprep.subr.bf16.mxu0 0
        %1316 = vmatpush2.bf16.msra.mxu0 0
        %1317 = vmatprep.subr.bf16.mxu0 0
        %1318 = vmatpush2.bf16.msra.mxu0 0
        %1319 = vmatprep.subr.bf16.mxu0 0
        %1320 = vmatpush2.bf16.msra.mxu0 0
        %1321 = vmatprep.mubr.bf16.mxu0 0
        %1322 = vmatmul.mubr.bf16.gmra.mxu0 %v1284
        %v1323 = vpop.f32.mrf.mxu0
        %v1324 = vadd.f32 0.0, %v1323
        %v1325 = vpop.f32.mrf.mxu0
        %v1326 = vpop.f32.mrf.mxu0
        %v1327 = vpop.f32.mrf.mxu0
        %1328 = vdwg.mxu0
        %v1330 = vsel %vm1003, %v1234, 0
        %v1333 = vsel %vm1239, %v1001, 0
        %1335 = vmatprep.subr.bf16.mxu0 0
        %1336 = vmatpush1.bf16.msra.mxu0 0
        %1337 = vmatprep.subr.bf16.mxu0 0
        %1338 = vmatpush1.bf16.msra.mxu0 0
        %1339 = vmatprep.subr.bf16.mxu0 0
        %1340 = vmatpush1.bf16.msra.mxu0 0
        %1341 = vmatprep.subr.bf16.mxu0 0
        %1342 = vmatpush1.bf16.msra.mxu0 0
        %1343 = vmatprep.subr.bf16.mxu0 0
        %1344 = vmatpush1.bf16.msra.mxu0 0
        %1345 = vmatprep.subr.bf16.mxu0 0
        %1346 = vmatpush1.bf16.msra.mxu0 0
        %1347 = vmatprep.subr.bf16.mxu0 0
        %1348 = vmatpush1.bf16.msra.mxu0 0
        %1349 = vmatprep.subr.bf16.mxu0 0
        %1350 = vmatpush1.bf16.msra.mxu0 %v1333
        %1351 = vmatprep.subr.bf16.mxu0 0
        %1352 = vmatpush2.bf16.msra.mxu0 0
        %1353 = vmatprep.subr.bf16.mxu0 0
        %1354 = vmatpush2.bf16.msra.mxu0 0
        %1355 = vmatprep.subr.bf16.mxu0 0
        %1356 = vmatpush2.bf16.msra.mxu0 0
        %1357 = vmatprep.subr.bf16.mxu0 0
        %1358 = vmatpush2.bf16.msra.mxu0 0
        %1359 = vmatprep.subr.bf16.mxu0 0
        %1360 = vmatpush2.bf16.msra.mxu0 0
        %1361 = vmatprep.subr.bf16.mxu0 0
        %1362 = vmatpush2.bf16.msra.mxu0 0
        %1363 = vmatprep.subr.bf16.mxu0 0
        %1364 = vmatpush2.bf16.msra.mxu0 0
        %1365 = vmatprep.subr.bf16.mxu0 0
        %1366 = vmatpush2.bf16.msra.mxu0 0
        %1367 = vmatprep.mubr.bf16.mxu0 0
        %1368 = vmatmul.mubr.bf16.gmra.mxu0 %v1330
        %v1369 = vpop.f32.mrf.mxu0
        %v1370 = vadd.f32 0.0, %v1369
        %v1371 = vpop.f32.mrf.mxu0
        %v1372 = vpop.f32.mrf.mxu0
        %v1373 = vpop.f32.mrf.mxu0
        %1374 = vdwg.mxu0
        %v1376 = vsel %vm1003, %v1235, 0
        %v1379 = vsel %vm1239, %v1002, 0
        %1381 = vmatprep.subr.bf16.mxu0 0
        %1382 = vmatpush1.bf16.msra.mxu0 0
        %1383 = vmatprep.subr.bf16.mxu0 0
        %1384 = vmatpush1.bf16.msra.mxu0 0
        %1385 = vmatprep.subr.bf16.mxu0 0
        %1386 = vmatpush1.bf16.msra.mxu0 0
        %1387 = vmatprep.subr.bf16.mxu0 0
        %1388 = vmatpush1.bf16.msra.mxu0 0
        %1389 = vmatprep.subr.bf16.mxu0 0
        %1390 = vmatpush1.bf16.msra.mxu0 0
        %1391 = vmatprep.subr.bf16.mxu0 0
        %1392 = vmatpush1.bf16.msra.mxu0 0
        %1393 = vmatprep.subr.bf16.mxu0 0
        %1394 = vmatpush1.bf16.msra.mxu0 0
        %1395 = vmatprep.subr.bf16.mxu0 0
        %1396 = vmatpush1.bf16.msra.mxu0 %v1379
        %1397 = vmatprep.subr.bf16.mxu0 0
        %1398 = vmatpush2.bf16.msra.mxu0 0
        %1399 = vmatprep.subr.bf16.mxu0 0
        %1400 = vmatpush2.bf16.msra.mxu0 0
        %1401 = vmatprep.subr.bf16.mxu0 0
        %1402 = vmatpush2.bf16.msra.mxu0 0
        %1403 = vmatprep.subr.bf16.mxu0 0
        %1404 = vmatpush2.bf16.msra.mxu0 0
        %1405 = vmatprep.subr.bf16.mxu0 0
        %1406 = vmatpush2.bf16.msra.mxu0 0
        %1407 = vmatprep.subr.bf16.mxu0 0
        %1408 = vmatpush2.bf16.msra.mxu0 0
        %1409 = vmatprep.subr.bf16.mxu0 0
        %1410 = vmatpush2.bf16.msra.mxu0 0
        %1411 = vmatprep.subr.bf16.mxu0 0
        %1412 = vmatpush2.bf16.msra.mxu0 0
        %1413 = vmatprep.mubr.bf16.mxu0 0
        %1414 = vmatmul.mubr.bf16.gmra.mxu0 %v1376
        %v1415 = vpop.f32.mrf.mxu0
        %v1416 = vadd.f32 0.0, %v1415
        %v1417 = vpop.f32.mrf.mxu0
        %v1418 = vpop.f32.mrf.mxu0
        %v1419 = vpop.f32.mrf.mxu0
        %1420 = vdwg.mxu0
        %v1421 = vcombine.low %v1278, %v1370
        %v1422 = vcombine.high %v1278, %v1370
        %v1424 = vunpack.c.l.s4 1983009808
        %v1425 = vunpack.c.0.s8 %v1424
        %v1426 = vlaneseq
        %v1427 = vshrl.u32 %v1426, 7
        %v1428 = vsub.s32 %v1425, %v1427
        %v1429 = vrot.slane %v1421, %v1428
        %v1431 = vunpack.c.l.s4 1983009808
        %v1432 = vunpack.c.0.s8 %v1431
        %v1433 = vlaneseq
        %v1434 = vshrl.u32 %v1433, 7
        %v1435 = vsub.s32 %v1432, %v1434
        %v1436 = vrot.slane %v1422, %v1435
        %v1437 = vcombine.low %v1324, %v1416
        %v1438 = vcombine.high %v1324, %v1416
        %v1440 = vunpack.c.l.s4 1983009808
        %v1441 = vunpack.c.0.s8 %v1440
        %v1442 = vlaneseq
        %v1443 = vshrl.u32 %v1442, 7
        %v1444 = vsub.s32 %v1441, %v1443
        %v1445 = vrot.slane %v1437, %v1444
        %v1447 = vunpack.c.l.s4 1983009808
        %v1448 = vunpack.c.0.s8 %v1447
        %v1449 = vlaneseq
        %v1450 = vshrl.u32 %v1449, 7
        %v1451 = vsub.s32 %v1448, %v1450
        %v1452 = vrot.slane %v1438, %v1451
        %v1453 = vcombine.low %v1429, %v1445
        %v1454 = vcombine.high %v1429, %v1445
        %v1456 = vunpack.c.l.s4 1934713408
        %v1457 = vunpack.c.0.s8 %v1456
        %v1458 = vlaneseq
        %v1459 = vshrl.u32 %v1458, 7
        %v1460 = vsub.s32 %v1457, %v1459
        %v1461 = vrot.slane %v1453, %v1460
        %v1463 = vunpack.c.l.s4 1934713408
        %v1464 = vunpack.c.0.s8 %v1463
        %v1465 = vlaneseq
        %v1466 = vshrl.u32 %v1465, 7
        %v1467 = vsub.s32 %v1464, %v1466
        %v1468 = vrot.slane %v1454, %v1467
        %v1469 = vcombine.low %v1436, %v1452
        %v1470 = vcombine.high %v1436, %v1452
        %v1472 = vunpack.c.l.s4 1934713408
        %v1473 = vunpack.c.0.s8 %v1472
        %v1474 = vlaneseq
        %v1475 = vshrl.u32 %v1474, 7
        %v1476 = vsub.s32 %v1473, %v1475
        %v1477 = vrot.slane %v1469, %v1476
        %v1479 = vunpack.c.l.s4 1934713408
        %v1480 = vunpack.c.0.s8 %v1479
        %v1481 = vlaneseq
        %v1482 = vshrl.u32 %v1481, 7
        %v1483 = vsub.s32 %v1480, %v1482
        %v1484 = vrot.slane %v1470, %v1483
        %v1485 = vcombine.high %v1461, 0.0
        %v1486 = vcombine.high %v1468, 0.0
        %v1487 = vcombine.high %v1477, 0.0
        %v1488 = vcombine.high %v1484, 0.0
        %v1489 = vcombine.low %v1461, %v1468
        %v1491 = vunpack.c.l.s4 1983009808
        %v1492 = vunpack.c.0.s8 %v1491
        %v1493 = vlaneseq
        %v1494 = vshrl.u32 %v1493, 7
        %v1495 = vsub.s32 %v1492, %v1494
        %v1496 = vrot.slane %v1489, %v1495
        %v1497 = vcombine.low %v1485, %v1486
        %v1499 = vunpack.c.l.s4 1983009808
        %v1500 = vunpack.c.0.s8 %v1499
        %v1501 = vlaneseq
        %v1502 = vshrl.u32 %v1501, 7
        %v1503 = vsub.s32 %v1500, %v1502
        %v1504 = vrot.slane %v1497, %v1503
        %v1505 = vcombine.low %v1477, %v1484
        %v1507 = vunpack.c.l.s4 1983009808
        %v1508 = vunpack.c.0.s8 %v1507
        %v1509 = vlaneseq
        %v1510 = vshrl.u32 %v1509, 7
        %v1511 = vsub.s32 %v1508, %v1510
        %v1512 = vrot.slane %v1505, %v1511
        %v1513 = vcombine.low %v1487, %v1488
        %v1515 = vunpack.c.l.s4 1983009808
        %v1516 = vunpack.c.0.s8 %v1515
        %v1517 = vlaneseq
        %v1518 = vshrl.u32 %v1517, 7
        %v1519 = vsub.s32 %v1516, %v1518
        %v1520 = vrot.slane %v1513, %v1519
        %v1521 = vcombine.low %v1496, %v1504
        %v1522 = vcombine.high %v1496, %v1504
        %v1524 = vunpack.c.l.s4 1934713408
        %v1525 = vunpack.c.0.s8 %v1524
        %v1526 = vlaneseq
        %v1527 = vshrl.u32 %v1526, 7
        %v1528 = vsub.s32 %v1525, %v1527
        %v1529 = vrot.slane %v1521, %v1528
        %v1531 = vunpack.c.l.s4 1934713408
        %v1532 = vunpack.c.0.s8 %v1531
        %v1533 = vlaneseq
        %v1534 = vshrl.u32 %v1533, 7
        %v1535 = vsub.s32 %v1532, %v1534
        %v1536 = vrot.slane %v1522, %v1535
        %v1537 = vcombine.low %v1512, %v1520
        %v1538 = vcombine.high %v1512, %v1520
        %v1540 = vunpack.c.l.s4 1934713408
        %v1541 = vunpack.c.0.s8 %v1540
        %v1542 = vlaneseq
        %v1543 = vshrl.u32 %v1542, 7
        %v1544 = vsub.s32 %v1541, %v1543
        %v1545 = vrot.slane %v1537, %v1544
        %v1547 = vunpack.c.l.s4 1934713408
        %v1548 = vunpack.c.0.s8 %v1547
        %v1549 = vlaneseq
        %v1550 = vshrl.u32 %v1549, 7
        %v1551 = vsub.s32 %v1548, %v1550
        %v1552 = vrot.slane %v1538, %v1551
        %v1553 = vcombine.low %v1529, %v1545
        %v1554 = vcombine.high %v1529, %v1545
        %v1555 = vcombine.low %v1536, %v1552
        %v1556 = vcombine.high %v1536, %v1552
        %1558 = vrot.lane.b32.xlu0 %v1554, 8
        %v1559 = vpop.permute.xlu0 %1558
        %1562 = vrot.lane.b32.xlu0 %v1555, 16
        %v1563 = vpop.permute.xlu0 %1562
        %1566 = vrot.lane.b32.xlu0 %v1556, 24
        %v1567 = vpop.permute.xlu0 %1566
        %v1569 = vsel %vm1003, %v1553, %v1559
        %vm1570 = vcmask 130048
        %v1571 = vsel %vm1570, %v1569, %v1563
        %vm1572 = vcmask 195584
        %v1573 = vsel %vm1572, %v1571, %v1567
        %v1574 = vpack.c.bf16 %v1573, %v1573
        %v1575 = vld [vmem:[%s3] sm:$0xf]
        %v1576 = vld [vmem:[%s3 + $0x4] sm:$0xf]
        %v1577 = vld [vmem:[%s3 + $0x8] sm:$0xf]
        %v1578 = vld [vmem:[%s3 + $0xc] sm:$0xf]
        %v1580 = vlaneseq
        %v1581 = vshrl.u32 %v1580, 7
        %v1582 = vsub.s32 0, %v1581
        %v1583 = vrot.slane %v439, %v1582
        %v1589 = vunpack.c.l.b16 %v1575
        %v1590 = vunpack.c.l.b16 %v1576
        %v1591 = vunpack.c.l.b16 %v1577
        %v1592 = vunpack.c.l.b16 %v1578
        %v1593 = vpack.c.b16 %v1590, %v1589
        %v1594 = vpack.c.b16 %v1592, %v1591
        %v1598 = vsel %vm446, %v1574, 0
        %1600 = vmatprep.subr.bf16.mxu0 0
        %1601 = vmatpush1.bf16.msra.mxu0 0
        %1602 = vmatprep.subr.bf16.mxu0 0
        %1603 = vmatpush1.bf16.msra.mxu0 0
        %1604 = vmatprep.subr.bf16.mxu0 0
        %1605 = vmatpush1.bf16.msra.mxu0 0
        %1606 = vmatprep.subr.bf16.mxu0 0
        %1607 = vmatpush1.bf16.msra.mxu0 0
        %1608 = vmatprep.subr.bf16.mxu0 0
        %1609 = vmatpush1.bf16.msra.mxu0 0
        %1610 = vmatprep.subr.bf16.mxu0 0
        %1611 = vmatpush1.bf16.msra.mxu0 0
        %1612 = vmatprep.subr.bf16.mxu0 0
        %1613 = vmatpush1.bf16.msra.mxu0 %v1594
        %1614 = vmatprep.subr.bf16.mxu0 0
        %1615 = vmatpush1.bf16.msra.mxu0 %v1593
        %1616 = vmatprep.subr.bf16.mxu0 0
        %1617 = vmatpush2.bf16.msra.mxu0 0
        %1618 = vmatprep.subr.bf16.mxu0 0
        %1619 = vmatpush2.bf16.msra.mxu0 0
        %1620 = vmatprep.subr.bf16.mxu0 0
        %1621 = vmatpush2.bf16.msra.mxu0 0
        %1622 = vmatprep.subr.bf16.mxu0 0
        %1623 = vmatpush2.bf16.msra.mxu0 0
        %1624 = vmatprep.subr.bf16.mxu0 0
        %1625 = vmatpush2.bf16.msra.mxu0 0
        %1626 = vmatprep.subr.bf16.mxu0 0
        %1627 = vmatpush2.bf16.msra.mxu0 0
        %1628 = vmatprep.subr.bf16.mxu0 0
        %1629 = vmatpush2.bf16.msra.mxu0 0
        %1630 = vmatprep.subr.bf16.mxu0 0
        %1631 = vmatpush2.bf16.msra.mxu0 0
        %1632 = vmatprep.mubr.bf16.mxu0 0
        %1633 = vmatmul.mubr.bf16.gmra.mxu0 %v1598
        %v1634 = vpop.f32.mrf.mxu0
        %v1635 = vadd.f32 %v1583, %v1634
        %v1636 = vpop.f32.mrf.mxu0
        %v1637 = vpop.f32.mrf.mxu0
        %v1638 = vpop.f32.mrf.mxu0
        %1639 = vdwg.mxu0
        %v1640 = vadd.f32 %v437, %v1635
        %v1641 = vsel %vm446, %v1640, 0.0
        %1642 = vadd.xlane.f32.xlu0 %v1641
        %v1643 = vpop.xlane.xlu0 %1642
        %v1644 = vmul.f32 %v1643, %v450
        %v1645 = vsub.f32 %v1640, %v1644
        %v1646 = vmul.f32 %v1645, %v1645
        %v1647 = vsel %vm446, %v1646, 0.0
        %1648 = vadd.xlane.f32.xlu0 %v1647
        %v1649 = vpop.xlane.xlu0 %1648
        %v1650 = vmul.f32 %v1649, %v450
        %v1651 = vadd.f32 %v1650, 1e-05
        %v1652 = vrsqrt.pop %v1651
        %v1653 = vmul.f32 %v1645, %v1652
        %v1655 = vlaneseq
        %v1656 = vshrl.u32 %v1655, 7
        %v1657 = vsub.s32 0, %v1656
        %v1658 = vrot.slane %v442, %v1657
        %v1660 = vmul.f32 %v1653, %v1658
        %v1662 = vlaneseq
        %v1663 = vshrl.u32 %v1662, 7
        %v1664 = vsub.s32 0, %v1663
        %v1665 = vrot.slane %v443, %v1664
        %v1667 = vadd.f32 %v1660, %v1665
        %v1668 = vpack.c.bf16 %v1667, %v1667
        %v1669 = vld [vmem:[%s9] sm:$0xf]
        %v1670 = vld [vmem:[%s9 + $0x4] sm:$0xf]
        %v1671 = vld [vmem:[%s9 + $0x8] sm:$0xf]
        %v1672 = vld [vmem:[%s9 + $0xc] sm:$0xf]
        %v1674 = vlaneseq
        %v1675 = vshrl.u32 %v1674, 7
        %v1676 = vsub.s32 0, %v1675
        %v1677 = vrot.slane %v444, %v1676
        %v1683 = vunpack.c.l.b16 %v1669
        %v1684 = vunpack.c.l.b16 %v1670
        %v1685 = vunpack.c.l.b16 %v1671
        %v1686 = vunpack.c.l.b16 %v1672
        %v1687 = vpack.c.b16 %v1684, %v1683
        %v1688 = vpack.c.b16 %v1686, %v1685
        %v1692 = vsel %vm446, %v1668, 0
        %1694 = vmatprep.subr.bf16.mxu0 0
        %1695 = vmatpush1.bf16.msra.mxu0 0
        %1696 = vmatprep.subr.bf16.mxu0 0
        %1697 = vmatpush1.bf16.msra.mxu0 0
        %1698 = vmatprep.subr.bf16.mxu0 0
        %1699 = vmatpush1.bf16.msra.mxu0 0
        %1700 = vmatprep.subr.bf16.mxu0 0
        %1701 = vmatpush1.bf16.msra.mxu0 0
        %1702 = vmatprep.subr.bf16.mxu0 0
        %1703 = vmatpush1.bf16.msra.mxu0 0
        %1704 = vmatprep.subr.bf16.mxu0 0
        %1705 = vmatpush1.bf16.msra.mxu0 0
        %1706 = vmatprep.subr.bf16.mxu0 0
        %1707 = vmatpush1.bf16.msra.mxu0 %v1688
        %1708 = vmatprep.subr.bf16.mxu0 0
        %1709 = vmatpush1.bf16.msra.mxu0 %v1687
        %1710 = vmatprep.subr.bf16.mxu0 0
        %1711 = vmatpush2.bf16.msra.mxu0 0
        %1712 = vmatprep.subr.bf16.mxu0 0
        %1713 = vmatpush2.bf16.msra.mxu0 0
        %1714 = vmatprep.subr.bf16.mxu0 0
        %1715 = vmatpush2.bf16.msra.mxu0 0
        %1716 = vmatprep.subr.bf16.mxu0 0
        %1717 = vmatpush2.bf16.msra.mxu0 0
        %1718 = vmatprep.subr.bf16.mxu0 0
        %1719 = vmatpush2.bf16.msra.mxu0 0
        %1720 = vmatprep.subr.bf16.mxu0 0
        %1721 = vmatpush2.bf16.msra.mxu0 0
        %1722 = vmatprep.subr.bf16.mxu0 0
        %1723 = vmatpush2.bf16.msra.mxu0 0
        %1724 = vmatprep.subr.bf16.mxu0 0
        %1725 = vmatpush2.bf16.msra.mxu0 0
        %1726 = vmatprep.mubr.bf16.mxu0 0
        %1727 = vmatmul.mubr.bf16.gmra.mxu0 %v1692
        %v1728 = vpop.f32.mrf.mxu0
        %v1729 = vadd.f32 %v1677, %v1728
        %v1730 = vpop.f32.mrf.mxu0
        %v1731 = vpop.f32.mrf.mxu0
        %v1732 = vpop.f32.mrf.mxu0
        %1733 = vdwg.mxu0
        %v1734 = vmul.f32 %v1729, 1.702
        %v1735 = vxor.u32 %v1734, 2147483648
        %v1736 = vmul.f32 %v1735, 1.442695
        %v1737 = vpow.pop %v1736
        %v1738 = vadd.f32 %v1737, 1.0
        %v1739 = vrcp.pop %v1738
        %v1740 = vmul.f32 1.0, %v1739
        %v1741 = vmul.f32 %v1729, %v1740
        %v1742 = vpack.c.bf16 %v1741, %v1741
        %v1743 = vld [vmem:[%s11] sm:$0xf]
        %v1744 = vld [vmem:[%s11 + $0x4] sm:$0xf]
        %v1745 = vld [vmem:[%s11 + $0x8] sm:$0xf]
        %v1746 = vld [vmem:[%s11 + $0xc] sm:$0xf]
        %v1747 = vld [vmem:[%s11 + $0x10] sm:$0xf]
        %v1748 = vld [vmem:[%s11 + $0x14] sm:$0xf]
        %v1749 = vld [vmem:[%s11 + $0x18] sm:$0xf]
        %v1750 = vld [vmem:[%s11 + $0x1c] sm:$0xf]
        %v1751 = vld [vmem:[%s11 + $0x20] sm:$0xf]
        %v1752 = vld [vmem:[%s11 + $0x24] sm:$0xf]
        %v1753 = vld [vmem:[%s11 + $0x28] sm:$0xf]
        %v1754 = vld [vmem:[%s11 + $0x2c] sm:$0xf]
        %v1755 = vld [vmem:[%s11 + $0x30] sm:$0xf]
        %v1756 = vld [vmem:[%s11 + $0x34] sm:$0xf]
        %v1757 = vld [vmem:[%s11 + $0x38] sm:$0xf]
        %v1758 = vld [vmem:[%s11 + $0x3c] sm:$0xf]
        %v1760 = vlaneseq
        %v1761 = vshrl.u32 %v1760, 7
        %v1762 = vsub.s32 0, %v1761
        %v1763 = vrot.slane %v445, %v1762
        %v1781 = vunpack.c.l.b16 %v1743
        %v1782 = vunpack.c.l.b16 %v1744
        %v1783 = vunpack.c.l.b16 %v1745
        %v1784 = vunpack.c.l.b16 %v1746
        %v1785 = vunpack.c.l.b16 %v1747
        %v1786 = vunpack.c.l.b16 %v1748
        %v1787 = vunpack.c.l.b16 %v1749
        %v1788 = vunpack.c.l.b16 %v1750
        %v1789 = vunpack.c.l.b16 %v1751
        %v1790 = vunpack.c.l.b16 %v1752
        %v1791 = vunpack.c.l.b16 %v1753
        %v1792 = vunpack.c.l.b16 %v1754
        %v1793 = vunpack.c.l.b16 %v1755
        %v1794 = vunpack.c.l.b16 %v1756
        %v1795 = vunpack.c.l.b16 %v1757
        %v1796 = vunpack.c.l.b16 %v1758
        %v1797 = vpack.c.b16 %v1782, %v1781
        %v1798 = vpack.c.b16 %v1784, %v1783
        %v1799 = vpack.c.b16 %v1786, %v1785
        %v1800 = vpack.c.b16 %v1788, %v1787
        %v1801 = vpack.c.b16 %v1790, %v1789
        %v1802 = vpack.c.b16 %v1792, %v1791
        %v1803 = vpack.c.b16 %v1794, %v1793
        %v1804 = vpack.c.b16 %v1796, %v1795
        %1813 = vmatprep.subr.bf16.mxu0 0
        %1814 = vmatpush1.bf16.msra.mxu0 %v1804
        %1815 = vmatprep.subr.bf16.mxu0 0
        %1816 = vmatpush1.bf16.msra.mxu0 %v1803
        %1817 = vmatprep.subr.bf16.mxu0 0
        %1818 = vmatpush1.bf16.msra.mxu0 %v1802
        %1819 = vmatprep.subr.bf16.mxu0 0
        %1820 = vmatpush1.bf16.msra.mxu0 %v1801
        %1821 = vmatprep.subr.bf16.mxu0 0
        %1822 = vmatpush1.bf16.msra.mxu0 %v1800
        %1823 = vmatprep.subr.bf16.mxu0 0
        %1824 = vmatpush1.bf16.msra.mxu0 %v1799
        %1825 = vmatprep.subr.bf16.mxu0 0
        %1826 = vmatpush1.bf16.msra.mxu0 %v1798
        %1827 = vmatprep.subr.bf16.mxu0 0
        %1828 = vmatpush1.bf16.msra.mxu0 %v1797
        %1829 = vmatprep.subr.bf16.mxu0 0
        %1830 = vmatpush2.bf16.msra.mxu0 0
        %1831 = vmatprep.subr.bf16.mxu0 0
        %1832 = vmatpush2.bf16.msra.mxu0 0
        %1833 = vmatprep.subr.bf16.mxu0 0
        %1834 = vmatpush2.bf16.msra.mxu0 0
        %1835 = vmatprep.subr.bf16.mxu0 0
        %1836 = vmatpush2.bf16.msra.mxu0 0
        %1837 = vmatprep.subr.bf16.mxu0 0
        %1838 = vmatpush2.bf16.msra.mxu0 0
        %1839 = vmatprep.subr.bf16.mxu0 0
        %1840 = vmatpush2.bf16.msra.mxu0 0
        %1841 = vmatprep.subr.bf16.mxu0 0
        %1842 = vmatpush2.bf16.msra.mxu0 0
        %1843 = vmatprep.subr.bf16.mxu0 0
        %1844 = vmatpush2.bf16.msra.mxu0 0
        %1845 = vmatprep.mubr.bf16.mxu0 0
        %1846 = vmatmul.mubr.bf16.gmra.mxu0 %v1742
        %v1847 = vpop.f32.mrf.mxu0
        %v1848 = vadd.f32 %v1763, %v1847
        %v1849 = vpop.f32.mrf.mxu0
        %v1850 = vpop.f32.mrf.mxu0
        %v1851 = vpop.f32.mrf.mxu0
        %1852 = vdwg.mxu0
        %v1853 = vadd.f32 %v1640, %v1848
        %1854 = vst.msk [vmem:[%s431] sm:$0xff] %vm446, %v1853
        %s1855 = sand.u32 %s313, 1
        %s1856 = scalar_lea.sflag [#allocation3], %s1855
        %s1857 = sand.u32 %s313, 1
        %s1858 = smul.addr %s1857, 8
        %s1859 = scalar_lea.vmem [#allocation2], %s1858
        // Predicated region
        $region73: #{tpu_custom_call.1} parent=71 // pred_check
          %p1860 = pneg %p323
        $region74: #{tpu_custom_call.1} parent=71 // pred_check_branch
          %1862 = sbr.rel (%p1860) target = $region76
        $region75: #{tpu_custom_call.1} parent=71 // pred_region
          %s1864 = ssub.s32 128, 128
          %1865 = vsyncadd %s1856, %s1864
          %s1866 = smul.addr %s27, 128
          %s1867 = scalar_lea.hbm %s13, %s1866
          %s1869 = sshll.u32 %s1859, 4
          %s1870 = int_to_ptr.vmem [resolvable:$true] %s1869
          %1872 = dma.vmem_to_hbm [thread:$0]  %s1870, 128, %s1867, %s1856
        $region76: #{tpu_custom_call.1} parent=71 // pred_fallthru
          _
      $region72: #{tpu_custom_call.1} parent=5 // pred_fallthru
        _
      %p1873 = scmp.le.s32.totalorder 2, %s22
      // Predicated region
      $region77: #{tpu_custom_call.1} parent=5 // pred_check
        %p1874 = pneg %p1873
      $region78: #{tpu_custom_call.1} parent=5 // pred_check_branch
        %1876 = sbr.rel (%p1874) target = $region80
      $region79: #{tpu_custom_call.1} parent=5 // pred_region
        %s1877 = ssub.s32 %s22, 2
        // Predicated region
        $region81: #{tpu_custom_call.1} parent=79 // pred_check
          %p1878 = pneg %p329
        $region82: #{tpu_custom_call.1} parent=79 // pred_check_branch
          %1880 = sbr.rel (%p1878) target = $region84
        $region83: #{tpu_custom_call.1} parent=79 // pred_region
          %s1881 = sand.u32 %s314, 1
          %s1882 = scalar_lea.sflag [#allocation3], %s1881
          %s1883 = sand.u32 %s314, 1
          %s1884 = smul.addr %s1883, 8
          %s1885 = scalar_lea.vmem [#allocation2], %s1884
          %1886 = dma.done %s1882, 128
        $region84: #{tpu_custom_call.1} parent=79 // pred_fallthru
          _
      $region80: #{tpu_custom_call.1} parent=5 // pred_fallthru
        _
    $region6: #{tpu_custom_call.1} parent=1 // loop_footer
      %s26 = sadd.s32 1, %s22
    $region7: #{tpu_custom_call.1} parent=1 // loop_footer_branch
      %21 = sbr.rel target = $region3
    $region8: #{tpu_custom_call.1} parent=1 // loop_exit
      _
    %1887 = vsyncpa [#allocation3], 1
    %s1888 = scalar_lea.sflag [#allocation3], 1
    %1889 = vsyncpa %s1888, 1

</llo_original>
